<compile_context>
chip_gen: v6e
topology: v6e:2x2x1
jax: 0.10.0
libtpu: 0.0.40
codegen_flags: <defaults>
</compile_context>

<pallas_src>
import functools

import jax
import jax.numpy as jnp
from jax.experimental import pallas as pl
from jax.experimental.pallas import tpu as pltpu


def _round_up(x, m):
    return ((x + m - 1) // m) * m


def shared_vnet_kernel(x_ref, w1_ref, b1_ref, w2_ref, b2_ref, wh_ref, bh_ref,
                       o_ref, *, a_dim):
    # ---- trunk layer 1: fused concat([a,s,t]) @ W1 + b1, ReLU (f32 epilogue) ----
    z1 = jnp.dot(x_ref[...].astype(w1_ref.dtype), w1_ref[...],
                 preferred_element_type=jnp.float32)
    z1 = jnp.maximum(z1 + b1_ref[...], 0.0)

    # ---- trunk layer 2: hidden -> hidden, ReLU ----------------------------------
    z2 = jnp.dot(z1.astype(w2_ref.dtype), w2_ref[...],
                 preferred_element_type=jnp.float32)
    z2 = jnp.maximum(z2 + b2_ref[...], 0.0)

    # ---- fused heads: one N = out_pad dot, single lane-dense output -------------
    # columns [0, a_dim)            -> head_c (identity)
    # columns [a_dim, 2*a_dim)      -> head_r (tanh)
    # columns [2*a_dim, out_pad)    -> zero padding (tanh(0)=0, sliced off outside)
    h = jnp.dot(z2.astype(wh_ref.dtype), wh_ref[...],
                preferred_element_type=jnp.float32) + bh_ref[...]
    lane = jax.lax.broadcasted_iota(jnp.int32, h.shape, 1)
    h = jnp.where(lane >= a_dim, jnp.tanh(h), h)   # tanh -> EUP slot, r-slab only
    o_ref[...] = h.astype(o_ref.dtype)


def shared_vnet_forward(a, s, t, params, *, tile_b=512):
    """a: [B, a_dim], s: [B, s_dim], t: [B, 1] -> (head_c [B, a_dim], tanh(head_r) [B, a_dim])."""
    w1, b1, w2, b2, wh, bh = params
    B, a_dim = a.shape
    in_pad = w1.shape[0]
    H = w2.shape[0]
    out_pad = wh.shape[1]
    act_dtype = a.dtype
    sublane = 8 if jnp.dtype(act_dtype).itemsize >= 4 else 16

    # One-time fused concat in the wrapper (cheap: ~in_dim columns), padded so the
    # kernel sees a single [B, in_pad] operand matching the padded W1 rows.
    x = jnp.concatenate([a, s, t.astype(act_dtype)], axis=1)
    in_dim = x.shape[1]
    if in_pad != in_dim:
        x = jnp.pad(x, ((0, 0), (0, in_pad - in_dim)))

    # Batch tile: large (amortize ~0.35us per-step overhead), sublane-rounded,
    # but keep >= 2 grid steps when possible so the "parallel" axis can shard
    # across both TensorCores on v7x.
    Bp8 = _round_up(B, sublane)
    tile_b = max(sublane, min(_round_up(tile_b, sublane), Bp8))
    if Bp8 >= 2 * sublane:
        tile_b = min(tile_b, _round_up(pl.cdiv(Bp8, 2), sublane))
    n_tiles = pl.cdiv(B, tile_b)
    Bp = n_tiles * tile_b
    if Bp != B:
        x = jnp.pad(x, ((0, Bp - B), (0, 0)))

    consts = (w1, b1, w2, b2, wh, bh)

    # Explicit VMEM budget: double-buffered activation tiles + single-buffered
    # weights/biases + f32 intermediates, with generous headroom (v7x: 64 MiB phys).
    def _bytes(arr):
        return arr.size * jnp.dtype(arr.dtype).itemsize
    weight_bytes = sum(_bytes(w) for w in consts)
    act_bytes = 2 * tile_b * (in_pad + out_pad) * jnp.dtype(act_dtype).itemsize
    tmp_bytes = 4 * tile_b * H * 4
    vmem_bytes = min(max(2 * (weight_bytes + act_bytes + tmp_bytes), 16 << 20), 100 << 20)

    flops = 2 * Bp * (in_pad * H + H * H + H * out_pad)
    bytes_accessed = (_bytes(x) + Bp * out_pad * jnp.dtype(act_dtype).itemsize
                      + weight_bytes)
    cost = pl.CostEstimate(flops=flops, transcendentals=Bp * out_pad,
                           bytes_accessed=bytes_accessed)

    row_spec = pl.BlockSpec((tile_b, in_pad), lambda i: (i, 0))
    out_spec = pl.BlockSpec((tile_b, out_pad), lambda i: (i, 0))

    def const_spec(shape, buffered):
        # Constant-index blocks are revisited every step; single-buffer them.
        if buffered:
            return pl.BlockSpec(shape, lambda i: (0, 0), pipeline_mode=pl.Buffered(1))
        return pl.BlockSpec(shape, lambda i: (0, 0))

    def run(buffered):
        return pl.pallas_call(
            functools.partial(shared_vnet_kernel, a_dim=a_dim),
            out_shape=jax.ShapeDtypeStruct((Bp, out_pad), act_dtype),
            grid=(n_tiles,),
            in_specs=[row_spec] + [const_spec(c.shape, buffered) for c in consts],
            out_specs=out_spec,
            compiler_params=pltpu.CompilerParams(
                dimension_semantics=("parallel",),
                vmem_limit_bytes=vmem_bytes,
            ),
            cost_estimate=cost,
        )(x, *consts)

    try:
        out = run(buffered=True)
    except Exception:  # fall back cleanly if Buffered(1) is unsupported in this jax
        out = run(buffered=False)

    return out[:B, :a_dim], out[:B, a_dim:2 * a_dim]


def init_params(key, s_dim, a_dim, hidden=256, dtype=jnp.float32):
    """nn.Linear default init (uniform +-1/sqrt(fan_in)).
    W1 rows padded to in_pad; heads fused as [head_c | head_r | 0-pad] with a
    lane-dense (multiple-of-128) output width.  Pass dtype=jnp.bfloat16 on
    v6e/v7x to halve weight traffic (biases stay f32 for the f32 epilogue)."""
    in_dim = s_dim + a_dim + 1
    in_pad = _round_up(in_dim, 8)
    out_pad = _round_up(2 * a_dim, 128)
    ks = jax.random.split(key, 8)

    def linear(kw, kb, fan_in, fan_out):
        bound = 1.0 / (fan_in ** 0.5)
        w = jax.random.uniform(kw, (fan_in, fan_out), jnp.float32, -bound, bound)
        b = jax.random.uniform(kb, (1, fan_out), jnp.float32, -bound, bound)
        return w, b

    w1, b1 = linear(ks[0], ks[1], in_dim, hidden)
    w2, b2 = linear(ks[2], ks[3], hidden, hidden)
    wc, bc = linear(ks[4], ks[5], hidden, a_dim)
    wr, br = linear(ks[6], ks[7], hidden, a_dim)

    # Zero-pad extra W1 input rows (they multiply zero-padded x columns).
    w1 = jnp.pad(w1, ((0, in_pad - in_dim), (0, 0)))

    # Fused heads: [head_c | head_r | zero pad] along the output axis.
    wh = jnp.pad(jnp.concatenate([wc, wr], axis=1), ((0, 0), (0, out_pad - 2 * a_dim)))
    bh = jnp.pad(jnp.concatenate([bc, br], axis=1), ((0, 0), (0, out_pad - 2 * a_dim)))

    return (w1.astype(dtype), b1, w2.astype(dtype), b2, wh.astype(dtype), bh)


def shared_vnet_reference(a, s, t, params):
    w1, b1, w2, b2, wh, bh = params
    a_dim = a.shape[1]
    x = jnp.concatenate([a, s, t], axis=1)
    in_dim = x.shape[1]
    z1 = jnp.maximum(x @ w1.astype(jnp.float32)[:in_dim] + b1, 0.0)
    z2 = jnp.maximum(z1 @ w2.astype(jnp.float32) + b2, 0.0)
    h = z2 @ wh.astype(jnp.float32) + bh
    return h[:, :a_dim], jnp.tanh(h[:, a_dim:2 * a_dim])


if __name__ == "__main__":
    key = jax.random.PRNGKey(0)
    # Small shapes consistent with SharedVNet.forward(a, s, t); hidden matches
    # the module's default (256 also fills the 256-wide MXU on v6e/v7x).
    B, s_dim, a_dim, hidden = 64, 11, 4, 256
    k_p, k_a, k_s, k_t = jax.random.split(key, 4)

    params = init_params(k_p, s_dim, a_dim, hidden, dtype=jnp.float32)
    a = jax.random.normal(k_a, (B, a_dim), jnp.float32)
    s = jax.random.normal(k_s, (B, s_dim), jnp.float32)
    t = jax.random.uniform(k_t, (B, 1), jnp.float32)

    out_c, out_r = shared_vnet_forward(a, s, t, params, tile_b=512)
    jax.block_until_ready((out_c, out_r))

    ref_c, ref_r = shared_vnet_reference(a, s, t, params)
    assert out_c.shape == (B, a_dim) and out_r.shape == (B, a_dim)
    assert jnp.allclose(out_c, ref_c, atol=1e-4, rtol=1e-4)
    assert jnp.allclose(out_r, ref_r, atol=1e-4, rtol=1e-4)
    print("KERNEL_OK")
</pallas_src>

<mosaic_0001>
module attributes {stable_mosaic.version = 11 : i64} {
  func.func @shared_vnet_kernel(%arg0: i32, %arg1: memref<32x16xf32, #tpu.memory_space<vmem>>, %arg2: memref<16x256xf32, #tpu.memory_space<vmem>>, %arg3: memref<1x256xf32, #tpu.memory_space<vmem>>, %arg4: memref<256x256xf32, #tpu.memory_space<vmem>>, %arg5: memref<1x256xf32, #tpu.memory_space<vmem>>, %arg6: memref<256x128xf32, #tpu.memory_space<vmem>>, %arg7: memref<1x128xf32, #tpu.memory_space<vmem>>, %arg8: memref<32x128xf32, #tpu.memory_space<vmem>>) attributes {dimension_semantics = [#tpu.dimension_semantics<parallel>], iteration_bounds = array<i64: 2>, scalar_prefetch = 0 : i64, scratch_operands = 0 : i64, tpu.core_type = #tpu.core_type<tc>, window_params = [{transform_indices = @transform_0, window_bounds = array<i64: 32, 16>}, {pipeline_mode = #tpu.pipeline_mode<synchronous>, transform_indices = @transform_1, window_bounds = array<i64: 16, 256>}, {pipeline_mode = #tpu.pipeline_mode<synchronous>, transform_indices = @transform_2, window_bounds = array<i64: 1, 256>}, {pipeline_mode = #tpu.pipeline_mode<synchronous>, transform_indices = @transform_3, window_bounds = array<i64: 256, 256>}, {pipeline_mode = #tpu.pipeline_mode<synchronous>, transform_indices = @transform_4, window_bounds = array<i64: 1, 256>}, {pipeline_mode = #tpu.pipeline_mode<synchronous>, transform_indices = @transform_5, window_bounds = array<i64: 256, 128>}, {pipeline_mode = #tpu.pipeline_mode<synchronous>, transform_indices = @transform_6, window_bounds = array<i64: 1, 128>}, {transform_indices = @transform_7, window_bounds = array<i64: 32, 128>}]} {
    %c0 = arith.constant 0 : index
    %c0_0 = arith.constant 0 : index
    %0 = vector.load %arg1[%c0, %c0_0] : memref<32x16xf32, #tpu.memory_space<vmem>>, vector<32x16xf32>
    %c0_1 = arith.constant 0 : index
    %c0_2 = arith.constant 0 : index
    %1 = vector.load %arg2[%c0_1, %c0_2] : memref<16x256xf32, #tpu.memory_space<vmem>>, vector<16x256xf32>
    %cst = arith.constant dense<0.000000e+00> : vector<32x256xf32>
    %2 = tpu.matmul %0, %1, %cst {dimension_numbers = #tpu.dot_dimension_numbers<[1], [0], [0], [1], [0, 0, 1, 1], [], []>} : vector<32x16xf32>, vector<16x256xf32>, vector<32x256xf32> -> vector<32x256xf32>
    %c0_3 = arith.constant 0 : index
    %c0_4 = arith.constant 0 : index
    %3 = vector.load %arg3[%c0_3, %c0_4] : memref<1x256xf32, #tpu.memory_space<vmem>>, vector<1x256xf32>
    %4 = vector.broadcast %3 : vector<1x256xf32> to vector<32x256xf32>
    %5 = arith.addf %2, %4 : vector<32x256xf32>
    %cst_5 = arith.constant 0.000000e+00 : f32
    %6 = vector.broadcast %cst_5 : f32 to vector<32x256xf32>
    %7 = arith.maximumf %5, %6 : vector<32x256xf32>
    %c0_6 = arith.constant 0 : index
    %c0_7 = arith.constant 0 : index
    %8 = vector.load %arg4[%c0_6, %c0_7] : memref<256x256xf32, #tpu.memory_space<vmem>>, vector<256x256xf32>
    %cst_8 = arith.constant dense<0.000000e+00> : vector<32x256xf32>
    %9 = tpu.matmul %7, %8, %cst_8 {dimension_numbers = #tpu.dot_dimension_numbers<[1], [0], [0], [1], [0, 0, 1, 1], [], []>} : vector<32x256xf32>, vector<256x256xf32>, vector<32x256xf32> -> vector<32x256xf32>
    %c0_9 = arith.constant 0 : index
    %c0_10 = arith.constant 0 : index
    %10 = vector.load %arg5[%c0_9, %c0_10] : memref<1x256xf32, #tpu.memory_space<vmem>>, vector<1x256xf32>
    %11 = vector.broadcast %10 : vector<1x256xf32> to vector<32x256xf32>
    %12 = arith.addf %9, %11 : vector<32x256xf32>
    %cst_11 = arith.constant 0.000000e+00 : f32
    %13 = vector.broadcast %cst_11 : f32 to vector<32x256xf32>
    %14 = arith.maximumf %12, %13 : vector<32x256xf32>
    %c0_12 = arith.constant 0 : index
    %c0_13 = arith.constant 0 : index
    %15 = vector.load %arg6[%c0_12, %c0_13] : memref<256x128xf32, #tpu.memory_space<vmem>>, vector<256x128xf32>
    %cst_14 = arith.constant dense<0.000000e+00> : vector<32x128xf32>
    %16 = tpu.matmul %14, %15, %cst_14 {dimension_numbers = #tpu.dot_dimension_numbers<[1], [0], [0], [1], [0, 0, 1, 1], [], []>} : vector<32x256xf32>, vector<256x128xf32>, vector<32x128xf32> -> vector<32x128xf32>
    %c0_15 = arith.constant 0 : index
    %c0_16 = arith.constant 0 : index
    %17 = vector.load %arg7[%c0_15, %c0_16] : memref<1x128xf32, #tpu.memory_space<vmem>>, vector<1x128xf32>
    %18 = vector.broadcast %17 : vector<1x128xf32> to vector<32x128xf32>
    %19 = arith.addf %16, %18 : vector<32x128xf32>
    %20 = tpu.iota {dimensions = array<i32: 1>} : vector<32x128xi32>
    %c4_i32 = arith.constant 4 : i32
    %21 = vector.broadcast %c4_i32 : i32 to vector<32x128xi32>
    %22 = arith.cmpi sge, %20, %21 : vector<32x128xi32>
    %23 = math.tanh %19 : vector<32x128xf32>
    %24 = arith.select %22, %23, %19 : vector<32x128xi1>, vector<32x128xf32>
    %c0_17 = arith.constant 0 : index
    %c0_18 = arith.constant 0 : index
    %25 = vector.load %arg8[%c0_17, %c0_18] : memref<32x128xf32, #tpu.memory_space<vmem>>, vector<32x128xf32>
    tpu.vector_store %arg8[%c0_17, %c0_18], %24 {strides = array<i32>} : memref<32x128xf32, #tpu.memory_space<vmem>>, vector<32x128xf32>,
    return
  }
  func.func @transform_0(%arg0: i32) -> (i32, i32) {
    %c0_i32 = arith.constant 0 : i32
    %c0_i32_0 = arith.constant 0 : i32
    return %arg0, %c0_i32 : i32, i32
  }
  func.func @transform_1(%arg0: i32) -> (i32, i32) {
    %c0_i32 = arith.constant 0 : i32
    %c0_i32_0 = arith.constant 0 : i32
    %c0_i32_1 = arith.constant 0 : i32
    return %c0_i32, %c0_i32_0 : i32, i32
  }
  func.func @transform_2(%arg0: i32) -> (i32, i32) {
    %c0_i32 = arith.constant 0 : i32
    %c0_i32_0 = arith.constant 0 : i32
    %c0_i32_1 = arith.constant 0 : i32
    return %c0_i32, %c0_i32_0 : i32, i32
  }
  func.func @transform_3(%arg0: i32) -> (i32, i32) {
    %c0_i32 = arith.constant 0 : i32
    %c0_i32_0 = arith.constant 0 : i32
    %c0_i32_1 = arith.constant 0 : i32
    return %c0_i32, %c0_i32_0 : i32, i32
  }
  func.func @transform_4(%arg0: i32) -> (i32, i32) {
    %c0_i32 = arith.constant 0 : i32
    %c0_i32_0 = arith.constant 0 : i32
    %c0_i32_1 = arith.constant 0 : i32
    return %c0_i32, %c0_i32_0 : i32, i32
  }
  func.func @transform_5(%arg0: i32) -> (i32, i32) {
    %c0_i32 = arith.constant 0 : i32
    %c0_i32_0 = arith.constant 0 : i32
    %c0_i32_1 = arith.constant 0 : i32
    return %c0_i32, %c0_i32_0 : i32, i32
  }
  func.func @transform_6(%arg0: i32) -> (i32, i32) {
    %c0_i32 = arith.constant 0 : i32
    %c0_i32_0 = arith.constant 0 : i32
    %c0_i32_1 = arith.constant 0 : i32
    return %c0_i32, %c0_i32_0 : i32, i32
  }
  func.func @transform_7(%arg0: i32) -> (i32, i32) {
    %c0_i32 = arith.constant 0 : i32
    %c0_i32_0 = arith.constant 0 : i32
    return %arg0, %c0_i32 : i32, i32
  }
}

module attributes {stable_mosaic.version = 11 : i64} {
  func.func @shared_vnet_kernel(%arg0: i32, %arg1: memref<32x16xf32, #tpu.memory_space<vmem>>, %arg2: memref<16x256xf32, #tpu.memory_space<vmem>>, %arg3: memref<1x256xf32, #tpu.memory_space<vmem>>, %arg4: memref<256x256xf32, #tpu.memory_space<vmem>>, %arg5: memref<1x256xf32, #tpu.memory_space<vmem>>, %arg6: memref<256x128xf32, #tpu.memory_space<vmem>>, %arg7: memref<1x128xf32, #tpu.memory_space<vmem>>, %arg8: memref<32x128xf32, #tpu.memory_space<vmem>>) attributes {dimension_semantics = [#tpu.dimension_semantics<parallel>], iteration_bounds = array<i64: 2>, scalar_prefetch = 0 : i64, scratch_operands = 0 : i64, tpu.core_type = #tpu.core_type<tc>, window_params = [{transform_indices = @transform_0, window_bounds = array<i64: 32, 16>}, {pipeline_mode = #tpu.pipeline_mode<synchronous>, transform_indices = @transform_1, window_bounds = array<i64: 16, 256>}, {pipeline_mode = #tpu.pipeline_mode<synchronous>, transform_indices = @transform_2, window_bounds = array<i64: 1, 256>}, {pipeline_mode = #tpu.pipeline_mode<synchronous>, transform_indices = @transform_3, window_bounds = array<i64: 256, 256>}, {pipeline_mode = #tpu.pipeline_mode<synchronous>, transform_indices = @transform_4, window_bounds = array<i64: 1, 256>}, {pipeline_mode = #tpu.pipeline_mode<synchronous>, transform_indices = @transform_5, window_bounds = array<i64: 256, 128>}, {pipeline_mode = #tpu.pipeline_mode<synchronous>, transform_indices = @transform_6, window_bounds = array<i64: 1, 128>}, {transform_indices = @transform_7, window_bounds = array<i64: 32, 128>}]} {
    %c0 = arith.constant 0 : index
    %c0_0 = arith.constant 0 : index
    %0 = vector.load %arg1[%c0, %c0_0] : memref<32x16xf32, #tpu.memory_space<vmem>>, vector<32x16xf32>
    %c0_1 = arith.constant 0 : index
    %c0_2 = arith.constant 0 : index
    %1 = vector.load %arg2[%c0_1, %c0_2] : memref<16x256xf32, #tpu.memory_space<vmem>>, vector<16x256xf32>
    %cst = arith.constant dense<0.000000e+00> : vector<32x256xf32>
    %2 = tpu.matmul %0, %1, %cst {dimension_numbers = #tpu.dot_dimension_numbers<[1], [0], [0], [1], [0, 0, 1, 1], [], []>} : vector<32x16xf32>, vector<16x256xf32>, vector<32x256xf32> -> vector<32x256xf32>
    %c0_3 = arith.constant 0 : index
    %c0_4 = arith.constant 0 : index
    %3 = vector.load %arg3[%c0_3, %c0_4] : memref<1x256xf32, #tpu.memory_space<vmem>>, vector<1x256xf32>
    %4 = vector.broadcast %3 : vector<1x256xf32> to vector<32x256xf32>
    %5 = arith.addf %2, %4 : vector<32x256xf32>
    %cst_5 = arith.constant 0.000000e+00 : f32
    %6 = vector.broadcast %cst_5 : f32 to vector<32x256xf32>
    %7 = arith.maximumf %5, %6 : vector<32x256xf32>
    %c0_6 = arith.constant 0 : index
    %c0_7 = arith.constant 0 : index
    %8 = vector.load %arg4[%c0_6, %c0_7] : memref<256x256xf32, #tpu.memory_space<vmem>>, vector<256x256xf32>
    %cst_8 = arith.constant dense<0.000000e+00> : vector<32x256xf32>
    %9 = tpu.matmul %7, %8, %cst_8 {dimension_numbers = #tpu.dot_dimension_numbers<[1], [0], [0], [1], [0, 0, 1, 1], [], []>} : vector<32x256xf32>, vector<256x256xf32>, vector<32x256xf32> -> vector<32x256xf32>
    %c0_9 = arith.constant 0 : index
    %c0_10 = arith.constant 0 : index
    %10 = vector.load %arg5[%c0_9, %c0_10] : memref<1x256xf32, #tpu.memory_space<vmem>>, vector<1x256xf32>
    %11 = vector.broadcast %10 : vector<1x256xf32> to vector<32x256xf32>
    %12 = arith.addf %9, %11 : vector<32x256xf32>
    %cst_11 = arith.constant 0.000000e+00 : f32
    %13 = vector.broadcast %cst_11 : f32 to vector<32x256xf32>
    %14 = arith.maximumf %12, %13 : vector<32x256xf32>
    %c0_12 = arith.constant 0 : index
    %c0_13 = arith.constant 0 : index
    %15 = vector.load %arg6[%c0_12, %c0_13] : memref<256x128xf32, #tpu.memory_space<vmem>>, vector<256x128xf32>
    %cst_14 = arith.constant dense<0.000000e+00> : vector<32x128xf32>
    %16 = tpu.matmul %14, %15, %cst_14 {dimension_numbers = #tpu.dot_dimension_numbers<[1], [0], [0], [1], [0, 0, 1, 1], [], []>} : vector<32x256xf32>, vector<256x128xf32>, vector<32x128xf32> -> vector<32x128xf32>
    %c0_15 = arith.constant 0 : index
    %c0_16 = arith.constant 0 : index
    %17 = vector.load %arg7[%c0_15, %c0_16] : memref<1x128xf32, #tpu.memory_space<vmem>>, vector<1x128xf32>
    %18 = vector.broadcast %17 : vector<1x128xf32> to vector<32x128xf32>
    %19 = arith.addf %16, %18 : vector<32x128xf32>
    %20 = tpu.iota {dimensions = array<i32: 1>} : vector<32x128xi32>
    %c4_i32 = arith.constant 4 : i32
    %21 = vector.broadcast %c4_i32 : i32 to vector<32x128xi32>
    %22 = arith.cmpi sge, %20, %21 : vector<32x128xi32>
    %23 = math.tanh %19 : vector<32x128xf32>
    %24 = arith.select %22, %23, %19 : vector<32x128xi1>, vector<32x128xf32>
    %c0_17 = arith.constant 0 : index
    %c0_18 = arith.constant 0 : index
    %25 = vector.load %arg8[%c0_17, %c0_18] : memref<32x128xf32, #tpu.memory_space<vmem>>, vector<32x128xf32>
    tpu.vector_store %arg8[%c0_17, %c0_18], %24 {strides = array<i32>} : memref<32x128xf32, #tpu.memory_space<vmem>>, vector<32x128xf32>,
    return
  }
  func.func @transform_0(%arg0: i32) -> (i32, i32) {
    %c0_i32 = arith.constant 0 : i32
    %c0_i32_0 = arith.constant 0 : i32
    return %arg0, %c0_i32 : i32, i32
  }
  func.func @transform_1(%arg0: i32) -> (i32, i32) {
    %c0_i32 = arith.constant 0 : i32
    %c0_i32_0 = arith.constant 0 : i32
    %c0_i32_1 = arith.constant 0 : i32
    return %c0_i32, %c0_i32_0 : i32, i32
  }
  func.func @transform_2(%arg0: i32) -> (i32, i32) {
    %c0_i32 = arith.constant 0 : i32
    %c0_i32_0 = arith.constant 0 : i32
    %c0_i32_1 = arith.constant 0 : i32
    return %c0_i32, %c0_i32_0 : i32, i32
  }
  func.func @transform_3(%arg0: i32) -> (i32, i32) {
    %c0_i32 = arith.constant 0 : i32
    %c0_i32_0 = arith.constant 0 : i32
    %c0_i32_1 = arith.constant 0 : i32
    return %c0_i32, %c0_i32_0 : i32, i32
  }
  func.func @transform_4(%arg0: i32) -> (i32, i32) {
    %c0_i32 = arith.constant 0 : i32
    %c0_i32_0 = arith.constant 0 : i32
    %c0_i32_1 = arith.constant 0 : i32
    return %c0_i32, %c0_i32_0 : i32, i32
  }
  func.func @transform_5(%arg0: i32) -> (i32, i32) {
    %c0_i32 = arith.constant 0 : i32
    %c0_i32_0 = arith.constant 0 : i32
    %c0_i32_1 = arith.constant 0 : i32
    return %c0_i32, %c0_i32_0 : i32, i32
  }
  func.func @transform_6(%arg0: i32) -> (i32, i32) {
    %c0_i32 = arith.constant 0 : i32
    %c0_i32_0 = arith.constant 0 : i32
    %c0_i32_1 = arith.constant 0 : i32
    return %c0_i32, %c0_i32_0 : i32, i32
  }
  func.func @transform_7(%arg0: i32) -> (i32, i32) {
    %c0_i32 = arith.constant 0 : i32
    %c0_i32_0 = arith.constant 0 : i32
    return %arg0, %c0_i32 : i32, i32
  }
}

</mosaic_0001>

<llo_original>
// kernel: tpu_custom_call.1
$region0: #{tpu_custom_call.1}
  #allocation0 [shape = 'u32[]', space=smem, size = 0x4, offset = 0x4, fixed_abs, tag = 'smem constant byte address 0x4 - core index']
  #allocation1 [shape = 'u32[144,128]{1,0:T(1,128)}', space=vmem, size = 0x12000, scoped, tag = 'internal scratch']
  %s0 = inlined_call_operand.vmem [shape: f32[64,16], index: 0, kind: input, shape index: {}]
  %s1 = inlined_call_operand.vmem [shape: f32[16,256], index: 1, kind: input, shape index: {}]
  %s2 = inlined_call_operand.vmem [shape: f32[1,256], index: 2, kind: input, shape index: {}]
  %s3 = inlined_call_operand.hbm [shape: f32[256,256], index: 3, kind: input, shape index: {}]
  %s4 = inlined_call_operand.vmem [shape: f32[1,256], index: 4, kind: input, shape index: {}]
  %s5 = inlined_call_operand.hbm [shape: f32[256,128], index: 5, kind: input, shape index: {}]
  %s6 = inlined_call_operand.vmem [shape: f32[1,128], index: 6, kind: input, shape index: {}]
  %s7 = inlined_call_operand.hbm [shape: f32[64,128], index: 7, kind: output, shape index: {}]
  %s8 = sld [smem:[#allocation0]]
  $region69: #{tpu_custom_call.1} parent=0
    _
  %s10 = ssub.s32 1, %s8
  %s11 = scalar_select 0, %s10, %s8
  $region1: #{tpu_custom_call.1} parent=0
    #allocation2 [shape = 'u8[262144]{0}', space=vmem, size = 0x40000, scoped, tag = 'input window, operand 3, single buffered']
    #allocation3 [shape = 's32[2]{0}', space=sflag, size = 0x8, scoped, tag = 'scoped memory for tpu_custom_call.1']
    #allocation4 [shape = 's32[2]{0}', space=sflag, size = 0x8, scoped, tag = 'scoped memory for tpu_custom_call.1']
    #allocation5 [shape = 'u8[131072]{0}', space=vmem, size = 0x20000, scoped, tag = 'input window, operand 5, single buffered']
    #allocation6 [shape = 's32[1]{0}', space=sflag, size = 0x4, scoped, tag = 'scoped memory for tpu_custom_call.1']
    #allocation7 [shape = 'u8[32768]{0}', space=vmem, size = 0x8000, scoped, tag = 'output window, operand 0']
    %12 = vsyncpa [#allocation3], 0
    %13 = vsyncpa [#allocation6], 0
    %14 = vsyncpa [#allocation4], 0
    %s15 = scalar_lea.sflag [#allocation4], 1
    %16 = vsyncpa %s15, 0
    loop: start=0, step=1, limit=4
    $region2: #{tpu_custom_call.1} parent=1 // loop_pre_header
      _
    $region3: #{tpu_custom_call.1} parent=1 // loop_header
      %s18 = sphi 0, %s22
      %p19 = scmp.ge.s32.totalorder %s18, 4
      %s28 = sphi 0, %s30
      %s31 = sphi 0, %s28
      %s32 = sphi 0, %s31
      %s48 = sphi 0, %s32
      %s52 = sphi 0, %s52
      %s54 = sphi 0, %s52
      %s55 = sphi 0, %s54
      %s69 = sphi 0, %s55
      %s73 = sphi 0, %s73
      %s75 = sphi 0, %s73
      %s76 = sphi 0, %s75
      %s90 = sphi 0, %s76
      %s94 = sphi 0, %s94
      %s96 = sphi 0, %s94
      %s97 = sphi 0, %s96
      %s111 = sphi 0, %s97
      %s115 = sphi 0, %s115
      %s117 = sphi 0, %s115
      %s118 = sphi 0, %s117
      %s132 = sphi 0, %s118
      %s136 = sphi 0, %s136
      %s138 = sphi 0, %s136
      %s139 = sphi 0, %s138
      %s153 = sphi 0, %s139
      %s157 = sphi 0, %s157
      %s159 = sphi 0, %s157
      %s160 = sphi 0, %s159
      %s174 = sphi 0, %s160
      %s180 = sphi 0, %s182
      %s183 = sphi 0, %s180
      %s184 = sphi 0, %s183
      %s200 = sphi 0, %s184
    $region4: #{tpu_custom_call.1} parent=1 // loop_header_branch
      %21 = sbr.rel (%p19) target = $region8
    $region5: #{tpu_custom_call.1} parent=1 // loop_body
      %s23 = ssub.s32 %s18, 1
      %s24 = ssub.s32 %s18, 2
      %s25 = sadd.s32 %s18, 1
      %s26 = ssub.s32 %s18, %s25
      %p27 = scmp.eq.s32.totalorder %s26, 0
      %s29 = sadd.s32 %s28, 1
      %s30 = scalar_select %p27, %s28, %s29
      %p33 = pneg %p27
      %p34 = scmp.eq.s32.totalorder %s18, 1
      %p35 = por %p33, %p34
      %p36 = scmp.ne.s32.totalorder %s28, %s31
      %p37 = scmp.eq.s32.totalorder %s18, 0
      %p38 = por %p36, %p37
      %p39 = scmp.ne.s32.totalorder %s28, %s31
      %p40 = scmp.eq.s32.totalorder %s23, 1
      %p41 = por %p39, %p40
      %p42 = scmp.ne.s32.totalorder %s31, %s32
      %p43 = scmp.eq.s32.totalorder %s23, 0
      %p44 = por %p42, %p43
      %p45 = scmp.ne.s32.totalorder %s31, %s32
      %p46 = scmp.eq.s32.totalorder %s24, 1
      %p47 = por %p45, %p46
      %p49 = scmp.ne.s32.totalorder %s32, %s48
      %p50 = scmp.eq.s32.totalorder %s24, 0
      %p51 = por %p49, %p50
      %s53 = sadd.s32 %s52, 1
      %p56 = scmp.eq.s32.totalorder %s18, 1
      %p57 = scmp.ne.s32.totalorder %s52, %s54
      %p58 = scmp.eq.s32.totalorder %s18, 0
      %p59 = por %p57, %p58
      %p60 = scmp.ne.s32.totalorder %s52, %s54
      %p61 = scmp.eq.s32.totalorder %s23, 1
      %p62 = por %p60, %p61
      %p63 = scmp.ne.s32.totalorder %s54, %s55
      %p64 = scmp.eq.s32.totalorder %s23, 0
      %p65 = por %p63, %p64
      %p66 = scmp.ne.s32.totalorder %s54, %s55
      %p67 = scmp.eq.s32.totalorder %s24, 1
      %p68 = por %p66, %p67
      %p70 = scmp.ne.s32.totalorder %s55, %s69
      %p71 = scmp.eq.s32.totalorder %s24, 0
      %p72 = por %p70, %p71
      %s74 = sadd.s32 %s73, 1
      %p77 = scmp.eq.s32.totalorder %s18, 1
      %p78 = scmp.ne.s32.totalorder %s73, %s75
      %p79 = scmp.eq.s32.totalorder %s18, 0
      %p80 = por %p78, %p79
      %p81 = scmp.ne.s32.totalorder %s73, %s75
      %p82 = scmp.eq.s32.totalorder %s23, 1
      %p83 = por %p81, %p82
      %p84 = scmp.ne.s32.totalorder %s75, %s76
      %p85 = scmp.eq.s32.totalorder %s23, 0
      %p86 = por %p84, %p85
      %p87 = scmp.ne.s32.totalorder %s75, %s76
      %p88 = scmp.eq.s32.totalorder %s24, 1
      %p89 = por %p87, %p88
      %p91 = scmp.ne.s32.totalorder %s76, %s90
      %p92 = scmp.eq.s32.totalorder %s24, 0
      %p93 = por %p91, %p92
      %s95 = sadd.s32 %s94, 1
      %p98 = scmp.eq.s32.totalorder %s18, 1
      %p99 = scmp.ne.s32.totalorder %s94, %s96
      %p100 = scmp.eq.s32.totalorder %s18, 0
      %p101 = por %p99, %p100
      %p102 = scmp.ne.s32.totalorder %s94, %s96
      %p103 = scmp.eq.s32.totalorder %s23, 1
      %p104 = por %p102, %p103
      %p105 = scmp.ne.s32.totalorder %s96, %s97
      %p106 = scmp.eq.s32.totalorder %s23, 0
      %p107 = por %p105, %p106
      %p108 = scmp.ne.s32.totalorder %s96, %s97
      %p109 = scmp.eq.s32.totalorder %s24, 1
      %p110 = por %p108, %p109
      %p112 = scmp.ne.s32.totalorder %s97, %s111
      %p113 = scmp.eq.s32.totalorder %s24, 0
      %p114 = por %p112, %p113
      %s116 = sadd.s32 %s115, 1
      %p119 = scmp.eq.s32.totalorder %s18, 1
      %p120 = scmp.ne.s32.totalorder %s115, %s117
      %p121 = scmp.eq.s32.totalorder %s18, 0
      %p122 = por %p120, %p121
      %p123 = scmp.ne.s32.totalorder %s115, %s117
      %p124 = scmp.eq.s32.totalorder %s23, 1
      %p125 = por %p123, %p124
      %p126 = scmp.ne.s32.totalorder %s117, %s118
      %p127 = scmp.eq.s32.totalorder %s23, 0
      %p128 = por %p126, %p127
      %p129 = scmp.ne.s32.totalorder %s117, %s118
      %p130 = scmp.eq.s32.totalorder %s24, 1
      %p131 = por %p129, %p130
      %p133 = scmp.ne.s32.totalorder %s118, %s132
      %p134 = scmp.eq.s32.totalorder %s24, 0
      %p135 = por %p133, %p134
      %s137 = sadd.s32 %s136, 1
      %p140 = scmp.eq.s32.totalorder %s18, 1
      %p141 = scmp.ne.s32.totalorder %s136, %s138
      %p142 = scmp.eq.s32.totalorder %s18, 0
      %p143 = por %p141, %p142
      %p144 = scmp.ne.s32.totalorder %s136, %s138
      %p145 = scmp.eq.s32.totalorder %s23, 1
      %p146 = por %p144, %p145
      %p147 = scmp.ne.s32.totalorder %s138, %s139
      %p148 = scmp.eq.s32.totalorder %s23, 0
      %p149 = por %p147, %p148
      %p150 = scmp.ne.s32.totalorder %s138, %s139
      %p151 = scmp.eq.s32.totalorder %s24, 1
      %p152 = por %p150, %p151
      %p154 = scmp.ne.s32.totalorder %s139, %s153
      %p155 = scmp.eq.s32.totalorder %s24, 0
      %p156 = por %p154, %p155
      %s158 = sadd.s32 %s157, 1
      %p161 = scmp.eq.s32.totalorder %s18, 1
      %p162 = scmp.ne.s32.totalorder %s157, %s159
      %p163 = scmp.eq.s32.totalorder %s18, 0
      %p164 = por %p162, %p163
      %p165 = scmp.ne.s32.totalorder %s157, %s159
      %p166 = scmp.eq.s32.totalorder %s23, 1
      %p167 = por %p165, %p166
      %p168 = scmp.ne.s32.totalorder %s159, %s160
      %p169 = scmp.eq.s32.totalorder %s23, 0
      %p170 = por %p168, %p169
      %p171 = scmp.ne.s32.totalorder %s159, %s160
      %p172 = scmp.eq.s32.totalorder %s24, 1
      %p173 = por %p171, %p172
      %p175 = scmp.ne.s32.totalorder %s160, %s174
      %p176 = scmp.eq.s32.totalorder %s24, 0
      %p177 = por %p175, %p176
      %s178 = ssub.s32 %s18, %s25
      %p179 = scmp.eq.s32.totalorder %s178, 0
      %s181 = sadd.s32 %s180, 1
      %s182 = scalar_select %p179, %s180, %s181
      %p185 = pneg %p179
      %p186 = scmp.eq.s32.totalorder %s18, 1
      %p187 = por %p185, %p186
      %p188 = scmp.ne.s32.totalorder %s180, %s183
      %p189 = scmp.eq.s32.totalorder %s18, 0
      %p190 = por %p188, %p189
      %p191 = scmp.ne.s32.totalorder %s180, %s183
      %p192 = scmp.eq.s32.totalorder %s23, 1
      %p193 = por %p191, %p192
      %p194 = scmp.ne.s32.totalorder %s183, %s184
      %p195 = scmp.eq.s32.totalorder %s23, 0
      %p196 = por %p194, %p195
      %p197 = scmp.ne.s32.totalorder %s183, %s184
      %p198 = scmp.eq.s32.totalorder %s24, 1
      %p199 = por %p197, %p198
      %p201 = scmp.ne.s32.totalorder %s184, %s200
      %p202 = scmp.eq.s32.totalorder %s24, 0
      %p203 = por %p201, %p202
      %p204 = scmp.le.s32.totalorder 1, %s18
      %p205 = scmp.lt.s32.totalorder %s18, 3
      %p206 = pnand %p204, %p205
      %p207 = pneg %p206
      // Predicated region
      $region9: #{tpu_custom_call.1} parent=5 // pred_check
        _
      $region10: #{tpu_custom_call.1} parent=5 // pred_check_branch
        %209 = sbr.rel (%p206) target = $region12
      $region11: #{tpu_custom_call.1} parent=5 // pred_region
        %s210 = ssub.s32 %s18, 1
        // Predicated region
        $region13: #{tpu_custom_call.1} parent=11 // pred_check
          %p211 = pneg %p65
        $region14: #{tpu_custom_call.1} parent=11 // pred_check_branch
          %213 = sbr.rel (%p211) target = $region16
        $region15: #{tpu_custom_call.1} parent=11 // pred_region
          _
        $region16: #{tpu_custom_call.1} parent=11 // pred_fallthru
          _
        // Predicated region
        $region17: #{tpu_custom_call.1} parent=11 // pred_check
          %p214 = pneg %p86
        $region18: #{tpu_custom_call.1} parent=11 // pred_check_branch
          %216 = sbr.rel (%p214) target = $region20
        $region19: #{tpu_custom_call.1} parent=11 // pred_region
          _
        $region20: #{tpu_custom_call.1} parent=11 // pred_fallthru
          _
        // Predicated region
        $region21: #{tpu_custom_call.1} parent=11 // pred_check
          %p217 = pneg %p107
        $region22: #{tpu_custom_call.1} parent=11 // pred_check_branch
          %219 = sbr.rel (%p217) target = $region24
        $region23: #{tpu_custom_call.1} parent=11 // pred_region
          %s221 = ssub.s32 8192, 8192
          %222 = vsyncadd [#allocation3], %s221
          %s223 = sshll.u32 [#allocation2], 4
          %s224 = int_to_ptr.vmem [resolvable:$true] %s223
          %229 = dma.hbm_to_vmem [thread:$0]  %s3, 8192, %s224, [#allocation3], 256, 256, 16
        $region24: #{tpu_custom_call.1} parent=11 // pred_fallthru
          _
        // Predicated region
        $region25: #{tpu_custom_call.1} parent=11 // pred_check
          %p230 = pneg %p128
        $region26: #{tpu_custom_call.1} parent=11 // pred_check_branch
          %232 = sbr.rel (%p230) target = $region28
        $region27: #{tpu_custom_call.1} parent=11 // pred_region
          _
        $region28: #{tpu_custom_call.1} parent=11 // pred_fallthru
          _
        // Predicated region
        $region29: #{tpu_custom_call.1} parent=11 // pred_check
          %p233 = pneg %p149
        $region30: #{tpu_custom_call.1} parent=11 // pred_check_branch
          %235 = sbr.rel (%p233) target = $region32
        $region31: #{tpu_custom_call.1} parent=11 // pred_region
          %s237 = ssub.s32 4096, 4096
          %238 = vsyncadd [#allocation6], %s237
          %s239 = sshll.u32 [#allocation5], 4
          %s240 = int_to_ptr.vmem [resolvable:$true] %s239
          %245 = dma.hbm_to_vmem [thread:$0]  %s5, 4096, %s240, [#allocation6], 128, 128, 8
        $region32: #{tpu_custom_call.1} parent=11 // pred_fallthru
          _
        // Predicated region
        $region33: #{tpu_custom_call.1} parent=11 // pred_check
          %p246 = pneg %p170
        $region34: #{tpu_custom_call.1} parent=11 // pred_check_branch
          %248 = sbr.rel (%p246) target = $region36
        $region35: #{tpu_custom_call.1} parent=11 // pred_region
          _
        $region36: #{tpu_custom_call.1} parent=11 // pred_fallthru
          _
      $region12: #{tpu_custom_call.1} parent=5 // pred_fallthru
        _
      %p249 = scmp.lt.s32.totalorder %s18, 2
      // Predicated region
      $region37: #{tpu_custom_call.1} parent=5 // pred_check
        %p250 = pneg %p249
      $region38: #{tpu_custom_call.1} parent=5 // pred_check_branch
        %252 = sbr.rel (%p250) target = $region40
      $region39: #{tpu_custom_call.1} parent=5 // pred_region
        // Predicated region
        $region41: #{tpu_custom_call.1} parent=39 // pred_check
          %p253 = pneg %p38
        $region42: #{tpu_custom_call.1} parent=39 // pred_check_branch
          %255 = sbr.rel (%p253) target = $region44
        $region43: #{tpu_custom_call.1} parent=39 // pred_region
          %s256 = smul.u32 4, %s18
          %p257 = scmp.lt.s32.totalorder %s256, 7
          %s258 = scalar_select %p257, %s256, 7
          %s259 = smul.addr %s258, 8
          %s260 = scalar_lea.vmem %s0, %s259
          %s261 = smul.u32 4, %s18
        $region44: #{tpu_custom_call.1} parent=39 // pred_fallthru
          _
      $region40: #{tpu_custom_call.1} parent=5 // pred_fallthru
        _
      %p262 = scmp.le.s32.totalorder 1, %s18
      %p263 = scmp.lt.s32.totalorder %s18, 3
      %p264 = pnand %p262, %p263
      %p265 = pneg %p264
      // Predicated region
      $region45: #{tpu_custom_call.1} parent=5 // pred_check
        _
      $region46: #{tpu_custom_call.1} parent=5 // pred_check_branch
        %267 = sbr.rel (%p264) target = $region48
      $region47: #{tpu_custom_call.1} parent=5 // pred_region
        %s268 = ssub.s32 %s18, 1
        // Predicated region
        $region49: #{tpu_custom_call.1} parent=47 // pred_check
          %p269 = pneg %p107
        $region50: #{tpu_custom_call.1} parent=47 // pred_check_branch
          %271 = sbr.rel (%p269) target = $region52
        $region51: #{tpu_custom_call.1} parent=47 // pred_region
          %272 = dma.done [#allocation3], 8192
        $region52: #{tpu_custom_call.1} parent=47 // pred_fallthru
          _
        // Predicated region
        $region53: #{tpu_custom_call.1} parent=47 // pred_check
          %p273 = pneg %p149
        $region54: #{tpu_custom_call.1} parent=47 // pred_check_branch
          %275 = sbr.rel (%p273) target = $region56
        $region55: #{tpu_custom_call.1} parent=47 // pred_region
          %276 = dma.done [#allocation6], 4096
        $region56: #{tpu_custom_call.1} parent=47 // pred_fallthru
          _
        %s277 = smul.u32 4, %s23
        %p278 = scmp.lt.s32.totalorder %s277, 7
        %s279 = scalar_select %p278, %s277, 7
        %s280 = smul.addr %s279, 8
        %s281 = scalar_lea.vmem %s0, %s280
        %p282 = pneg %p44
        %p283 = pneg %p41
        %p284 = pneg %p65
        %p285 = pneg %p62
        %p286 = pneg %p86
        %p287 = pneg %p83
        %p288 = pneg %p107
        %p289 = pneg %p104
        %p290 = pneg %p128
        %p291 = pneg %p125
        %p292 = pneg %p149
        %p293 = pneg %p146
        %p294 = pneg %p170
        %p295 = pneg %p167
        %p296 = pneg %p196
        %p297 = pneg %p193
        %s298 = sand.u32 %s183, 1
        %s299 = scalar_lea.sflag [#allocation4], %s298
        %s300 = sand.u32 %s183, 1
        %s301 = smul.addr %s300, 32
        %s302 = scalar_lea.vmem [#allocation7], %s301
        %s303 = smul.u32 4, %s23
        %p304 = scmp.lt.s32.totalorder %s303, 7
        %s305 = scalar_select %p304, %s303, 7
        %s306 = smul.addr %s305, 8
        %s307 = scalar_lea.vmem %s0, %s306
        %s308 = smul.u32 4, %s23
        %s309 = smul.u32 4, %s23
        %v310 = vld [vmem:[%s307] sm:$0xff]
        %v311 = vld [vmem:[%s307 + $0x8] sm:$0xff]
        %v312 = vld [vmem:[%s307 + $0x10] sm:$0xff]
        %v313 = vld [vmem:[%s307 + $0x18] sm:$0xff]
        %v314 = vld [vmem:[%s1] sm:$0xff]
        %v315 = vld [vmem:[%s1 + $0x8] sm:$0xff]
        %v316 = vld [vmem:[%s1 + $0x10] sm:$0xff]
        %v317 = vld [vmem:[%s1 + $0x18] sm:$0xff]
        %v318 = vld [vmem:[%s2] sm:$0x3]
        %v320 = vlaneseq
        %v321 = vshrl.u32 %v320, 7
        %v322 = vsub.s32 0, %v321
        %v323 = vrot.slane %v318, %v322
        %v324 = vlaneseq
        %v325 = vshrl.u32 %v324, 7
        %v326 = vsub.s32 1, %v325
        %v327 = vrot.slane %v318, %v326
        %vm330 = vcmask 130048
        %v332 = vsel %vm330, %v310, 0
        %v335 = vsel %vm330, %v311, 0
        %v338 = vsel %vm330, %v312, 0
        %v341 = vsel %vm330, %v313, 0
        %343 = vmatprep.subr.mxu0 0.0
        %344 = vmatpush1.msra.mxu0 0.0
        %345 = vmatprep.subr.mxu0 0.0
        %346 = vmatpush1.msra.mxu0 0.0
        %347 = vmatprep.subr.mxu0 0.0
        %348 = vmatpush1.msra.mxu0 0.0
        %349 = vmatprep.subr.mxu0 0.0
        %350 = vmatpush1.msra.mxu0 0.0
        %351 = vmatprep.subr.mxu0 0.0
        %352 = vmatpush1.msra.mxu0 0.0
        %353 = vmatprep.subr.mxu0 0.0
        %354 = vmatpush1.msra.mxu0 0.0
        %355 = vmatprep.subr.mxu0 0.0
        %356 = vmatpush1.msra.mxu0 0.0
        %357 = vmatprep.subr.mxu0 0.0
        %358 = vmatpush1.msra.mxu0 0.0
        %359 = vmatprep.subr.mxu0 0.0
        %360 = vmatpush1.msra.mxu0 0.0
        %361 = vmatprep.subr.mxu0 0.0
        %362 = vmatpush1.msra.mxu0 0.0
        %363 = vmatprep.subr.mxu0 0.0
        %364 = vmatpush1.msra.mxu0 0.0
        %365 = vmatprep.subr.mxu0 0.0
        %366 = vmatpush1.msra.mxu0 0.0
        %367 = vmatprep.subr.mxu0 0.0
        %368 = vmatpush1.msra.mxu0 0.0
        %369 = vmatprep.subr.mxu0 0.0
        %370 = vmatpush1.msra.mxu0 0.0
        %371 = vmatprep.subr.mxu0 %v317
        %372 = vmatpush1.msra.mxu0 %v316
        %373 = vmatprep.subr.mxu0 %v315
        %374 = vmatpush1.msra.mxu0 %v314
        %375 = vmatprep.subr.mxu0 0.0
        %376 = vmatpush2.msra.mxu0 0.0
        %377 = vmatprep.subr.mxu0 0.0
        %378 = vmatpush2.msra.mxu0 0.0
        %379 = vmatprep.subr.mxu0 0.0
        %380 = vmatpush2.msra.mxu0 0.0
        %381 = vmatprep.subr.mxu0 0.0
        %382 = vmatpush2.msra.mxu0 0.0
        %383 = vmatprep.subr.mxu0 0.0
        %384 = vmatpush2.msra.mxu0 0.0
        %385 = vmatprep.subr.mxu0 0.0
        %386 = vmatpush2.msra.mxu0 0.0
        %387 = vmatprep.subr.mxu0 0.0
        %388 = vmatpush2.msra.mxu0 0.0
        %389 = vmatprep.subr.mxu0 0.0
        %390 = vmatpush2.msra.mxu0 0.0
        %391 = vmatprep.subr.mxu0 0.0
        %392 = vmatpush2.msra.mxu0 0.0
        %393 = vmatprep.subr.mxu0 0.0
        %394 = vmatpush2.msra.mxu0 0.0
        %395 = vmatprep.subr.mxu0 0.0
        %396 = vmatpush2.msra.mxu0 0.0
        %397 = vmatprep.subr.mxu0 0.0
        %398 = vmatpush2.msra.mxu0 0.0
        %399 = vmatprep.subr.mxu0 0.0
        %400 = vmatpush2.msra.mxu0 0.0
        %401 = vmatprep.subr.mxu0 0.0
        %402 = vmatpush2.msra.mxu0 0.0
        %403 = vmatprep.subr.mxu0 0.0
        %404 = vmatpush2.msra.mxu0 0.0
        %405 = vmatprep.subr.mxu0 0.0
        %406 = vmatpush2.msra.mxu0 0.0
        %407 = vmatprep.mubr.f32.mxu0 0.0
        %408 = vmatmul.mubr.f32.gmra.mxu0 %v332
        %v409 = vpop.f32.mrf.mxu0
        %v410 = vadd.f32 %v323, %v409
        %v411 = vpop.f32.mrf.mxu0
        %v412 = vadd.f32 %v327, %v411
        %413 = vmatprep.mubr.f32.mxu0 0.0
        %414 = vmatmul.mubr.f32.gmra.mxu0 %v335
        %v415 = vpop.f32.mrf.mxu0
        %v416 = vadd.f32 %v323, %v415
        %v417 = vpop.f32.mrf.mxu0
        %v418 = vadd.f32 %v327, %v417
        %419 = vmatprep.mubr.f32.mxu0 0.0
        %420 = vmatmul.mubr.f32.gmra.mxu0 %v338
        %v421 = vpop.f32.mrf.mxu0
        %v422 = vadd.f32 %v323, %v421
        %v423 = vpop.f32.mrf.mxu0
        %v424 = vadd.f32 %v327, %v423
        %425 = vmatprep.mubr.f32.mxu0 0.0
        %426 = vmatmul.mubr.f32.gmra.mxu0 %v341
        %v427 = vpop.f32.mrf.mxu0
        %v428 = vadd.f32 %v323, %v427
        %v429 = vpop.f32.mrf.mxu0
        %v430 = vadd.f32 %v327, %v429
        %431 = vdwg.mxu0
        %v432 = vmax.f32 %v410, 0.0
        %v433 = vmax.f32 %v412, 0.0
        %v434 = vmax.f32 %v416, 0.0
        %v435 = vmax.f32 %v418, 0.0
        %v436 = vmax.f32 %v422, 0.0
        %v437 = vmax.f32 %v424, 0.0
        %v438 = vmax.f32 %v428, 0.0
        %v439 = vmax.f32 %v430, 0.0
        %v440 = vld [vmem:[#allocation2] sm:$0xff]
        %v441 = vld [vmem:[#allocation2 + $0x8] sm:$0xff]
        %v442 = vld [vmem:[#allocation2 + $0x10] sm:$0xff]
        %v443 = vld [vmem:[#allocation2 + $0x18] sm:$0xff]
        %v444 = vld [vmem:[#allocation2 + $0x20] sm:$0xff]
        %v445 = vld [vmem:[#allocation2 + $0x28] sm:$0xff]
        %v446 = vld [vmem:[#allocation2 + $0x30] sm:$0xff]
        %v447 = vld [vmem:[#allocation2 + $0x38] sm:$0xff]
        %v448 = vld [vmem:[#allocation2 + $0x40] sm:$0xff]
        %v449 = vld [vmem:[#allocation2 + $0x48] sm:$0xff]
        %v450 = vld [vmem:[#allocation2 + $0x50] sm:$0xff]
        %v451 = vld [vmem:[#allocation2 + $0x58] sm:$0xff]
        %v452 = vld [vmem:[#allocation2 + $0x60] sm:$0xff]
        %v453 = vld [vmem:[#allocation2 + $0x68] sm:$0xff]
        %v454 = vld [vmem:[#allocation2 + $0x70] sm:$0xff]
        %v455 = vld [vmem:[#allocation2 + $0x78] sm:$0xff]
        %v456 = vld [vmem:[#allocation2 + $0x80] sm:$0xff]
        %v457 = vld [vmem:[#allocation2 + $0x88] sm:$0xff]
        %v458 = vld [vmem:[#allocation2 + $0x90] sm:$0xff]
        %v459 = vld [vmem:[#allocation2 + $0x98] sm:$0xff]
        %v460 = vld [vmem:[#allocation2 + $0xa0] sm:$0xff]
        %v461 = vld [vmem:[#allocation2 + $0xa8] sm:$0xff]
        %v462 = vld [vmem:[#allocation2 + $0xb0] sm:$0xff]
        %v463 = vld [vmem:[#allocation2 + $0xb8] sm:$0xff]
        %v464 = vld [vmem:[#allocation2 + $0xc0] sm:$0xff]
        %v465 = vld [vmem:[#allocation2 + $0xc8] sm:$0xff]
        %v466 = vld [vmem:[#allocation2 + $0xd0] sm:$0xff]
        %v467 = vld [vmem:[#allocation2 + $0xd8] sm:$0xff]
        %v468 = vld [vmem:[#allocation2 + $0xe0] sm:$0xff]
        %v469 = vld [vmem:[#allocation2 + $0xe8] sm:$0xff]
        %v470 = vld [vmem:[#allocation2 + $0xf0] sm:$0xff]
        %v471 = vld [vmem:[#allocation2 + $0xf8] sm:$0xff]
        %v472 = vld [vmem:[#allocation2 + $0x100] sm:$0xff]
        %v473 = vld [vmem:[#allocation2 + $0x108] sm:$0xff]
        %v474 = vld [vmem:[#allocation2 + $0x110] sm:$0xff]
        %v475 = vld [vmem:[#allocation2 + $0x118] sm:$0xff]
        %v476 = vld [vmem:[#allocation2 + $0x120] sm:$0xff]
        %v477 = vld [vmem:[#allocation2 + $0x128] sm:$0xff]
        %v478 = vld [vmem:[#allocation2 + $0x130] sm:$0xff]
        %v479 = vld [vmem:[#allocation2 + $0x138] sm:$0xff]
        %v480 = vld [vmem:[#allocation2 + $0x140] sm:$0xff]
        %v481 = vld [vmem:[#allocation2 + $0x148] sm:$0xff]
        %v482 = vld [vmem:[#allocation2 + $0x150] sm:$0xff]
        %v483 = vld [vmem:[#allocation2 + $0x158] sm:$0xff]
        %v484 = vld [vmem:[#allocation2 + $0x160] sm:$0xff]
        %v485 = vld [vmem:[#allocation2 + $0x168] sm:$0xff]
        %v486 = vld [vmem:[#allocation2 + $0x170] sm:$0xff]
        %v487 = vld [vmem:[#allocation2 + $0x178] sm:$0xff]
        %v488 = vld [vmem:[#allocation2 + $0x180] sm:$0xff]
        %v489 = vld [vmem:[#allocation2 + $0x188] sm:$0xff]
        %v490 = vld [vmem:[#allocation2 + $0x190] sm:$0xff]
        %v491 = vld [vmem:[#allocation2 + $0x198] sm:$0xff]
        %v492 = vld [vmem:[#allocation2 + $0x1a0] sm:$0xff]
        %v493 = vld [vmem:[#allocation2 + $0x1a8] sm:$0xff]
        %v494 = vld [vmem:[#allocation2 + $0x1b0] sm:$0xff]
        %v495 = vld [vmem:[#allocation2 + $0x1b8] sm:$0xff]
        %v496 = vld [vmem:[#allocation2 + $0x1c0] sm:$0xff]
        %v497 = vld [vmem:[#allocation2 + $0x1c8] sm:$0xff]
        %v498 = vld [vmem:[#allocation2 + $0x1d0] sm:$0xff]
        %v499 = vld [vmem:[#allocation2 + $0x1d8] sm:$0xff]
        %v500 = vld [vmem:[#allocation2 + $0x1e0] sm:$0xff]
        %v501 = vld [vmem:[#allocation2 + $0x1e8] sm:$0xff]
        %v502 = vld [vmem:[#allocation2 + $0x1f0] sm:$0xff]
        %v503 = vld [vmem:[#allocation2 + $0x1f8] sm:$0xff]
        %v504 = vld [vmem:[%s4] sm:$0x3]
        %v506 = vlaneseq
        %v507 = vshrl.u32 %v506, 7
        %v508 = vsub.s32 0, %v507
        %v509 = vrot.slane %v504, %v508
        %v510 = vlaneseq
        %v511 = vshrl.u32 %v510, 7
        %v512 = vsub.s32 1, %v511
        %v513 = vrot.slane %v504, %v512
        %516 = vmatprep.subr.mxu0 %v471
        %517 = vmatpush1.msra.mxu0 %v470
        %518 = vmatprep.subr.mxu0 %v469
        %519 = vmatpush1.msra.mxu0 %v468
        %520 = vmatprep.subr.mxu0 %v467
        %521 = vmatpush1.msra.mxu0 %v466
        %522 = vmatprep.subr.mxu0 %v465
        %523 = vmatpush1.msra.mxu0 %v464
        %524 = vmatprep.subr.mxu0 %v463
        %525 = vmatpush1.msra.mxu0 %v462
        %526 = vmatprep.subr.mxu0 %v461
        %527 = vmatpush1.msra.mxu0 %v460
        %528 = vmatprep.subr.mxu0 %v459
        %529 = vmatpush1.msra.mxu0 %v458
        %530 = vmatprep.subr.mxu0 %v457
        %531 = vmatpush1.msra.mxu0 %v456
        %532 = vmatprep.subr.mxu0 %v455
        %533 = vmatpush1.msra.mxu0 %v454
        %534 = vmatprep.subr.mxu0 %v453
        %535 = vmatpush1.msra.mxu0 %v452
        %536 = vmatprep.subr.mxu0 %v451
        %537 = vmatpush1.msra.mxu0 %v450
        %538 = vmatprep.subr.mxu0 %v449
        %539 = vmatpush1.msra.mxu0 %v448
        %540 = vmatprep.subr.mxu0 %v447
        %541 = vmatpush1.msra.mxu0 %v446
        %542 = vmatprep.subr.mxu0 %v445
        %543 = vmatpush1.msra.mxu0 %v444
        %544 = vmatprep.subr.mxu0 %v443
        %545 = vmatpush1.msra.mxu0 %v442
        %546 = vmatprep.subr.mxu0 %v441
        %547 = vmatpush1.msra.mxu0 %v440
        %548 = vmatprep.subr.mxu0 %v503
        %549 = vmatpush2.msra.mxu0 %v502
        %550 = vmatprep.subr.mxu0 %v501
        %551 = vmatpush2.msra.mxu0 %v500
        %552 = vmatprep.subr.mxu0 %v499
        %553 = vmatpush2.msra.mxu0 %v498
        %554 = vmatprep.subr.mxu0 %v497
        %555 = vmatpush2.msra.mxu0 %v496
        %556 = vmatprep.subr.mxu0 %v495
        %557 = vmatpush2.msra.mxu0 %v494
        %558 = vmatprep.subr.mxu0 %v493
        %559 = vmatpush2.msra.mxu0 %v492
        %560 = vmatprep.subr.mxu0 %v491
        %561 = vmatpush2.msra.mxu0 %v490
        %562 = vmatprep.subr.mxu0 %v489
        %563 = vmatpush2.msra.mxu0 %v488
        %564 = vmatprep.subr.mxu0 %v487
        %565 = vmatpush2.msra.mxu0 %v486
        %566 = vmatprep.subr.mxu0 %v485
        %567 = vmatpush2.msra.mxu0 %v484
        %568 = vmatprep.subr.mxu0 %v483
        %569 = vmatpush2.msra.mxu0 %v482
        %570 = vmatprep.subr.mxu0 %v481
        %571 = vmatpush2.msra.mxu0 %v480
        %572 = vmatprep.subr.mxu0 %v479
        %573 = vmatpush2.msra.mxu0 %v478
        %574 = vmatprep.subr.mxu0 %v477
        %575 = vmatpush2.msra.mxu0 %v476
        %576 = vmatprep.subr.mxu0 %v475
        %577 = vmatpush2.msra.mxu0 %v474
        %578 = vmatprep.subr.mxu0 %v473
        %579 = vmatpush2.msra.mxu0 %v472
        %580 = vmatprep.mubr.f32.mxu0 %v433
        %581 = vmatmul.mubr.f32.gmra.mxu0 %v432
        %v582 = vpop.f32.mrf.mxu0
        %v583 = vadd.f32 %v509, %v582
        %v584 = vpop.f32.mrf.mxu0
        %v585 = vadd.f32 %v513, %v584
        %586 = vmatprep.mubr.f32.mxu0 %v435
        %587 = vmatmul.mubr.f32.gmra.mxu0 %v434
        %v588 = vpop.f32.mrf.mxu0
        %v589 = vadd.f32 %v509, %v588
        %v590 = vpop.f32.mrf.mxu0
        %v591 = vadd.f32 %v513, %v590
        %592 = vmatprep.mubr.f32.mxu0 %v437
        %593 = vmatmul.mubr.f32.gmra.mxu0 %v436
        %v594 = vpop.f32.mrf.mxu0
        %v595 = vadd.f32 %v509, %v594
        %v596 = vpop.f32.mrf.mxu0
        %v597 = vadd.f32 %v513, %v596
        %598 = vmatprep.mubr.f32.mxu0 %v439
        %599 = vmatmul.mubr.f32.gmra.mxu0 %v438
        %v600 = vpop.f32.mrf.mxu0
        %v601 = vadd.f32 %v509, %v600
        %v602 = vpop.f32.mrf.mxu0
        %v603 = vadd.f32 %v513, %v602
        %604 = vdwg.mxu0
        %v605 = vmax.f32 %v583, 0.0
        %v606 = vmax.f32 %v585, 0.0
        %v607 = vmax.f32 %v589, 0.0
        %v608 = vmax.f32 %v591, 0.0
        %v609 = vmax.f32 %v595, 0.0
        %v610 = vmax.f32 %v597, 0.0
        %v611 = vmax.f32 %v601, 0.0
        %v612 = vmax.f32 %v603, 0.0
        %v613 = vld [vmem:[#allocation5] sm:$0xff]
        %v614 = vld [vmem:[#allocation5 + $0x8] sm:$0xff]
        %v615 = vld [vmem:[#allocation5 + $0x10] sm:$0xff]
        %v616 = vld [vmem:[#allocation5 + $0x18] sm:$0xff]
        %v617 = vld [vmem:[#allocation5 + $0x20] sm:$0xff]
        %v618 = vld [vmem:[#allocation5 + $0x28] sm:$0xff]
        %v619 = vld [vmem:[#allocation5 + $0x30] sm:$0xff]
        %v620 = vld [vmem:[#allocation5 + $0x38] sm:$0xff]
        %v621 = vld [vmem:[#allocation5 + $0x40] sm:$0xff]
        %v622 = vld [vmem:[#allocation5 + $0x48] sm:$0xff]
        %v623 = vld [vmem:[#allocation5 + $0x50] sm:$0xff]
        %v624 = vld [vmem:[#allocation5 + $0x58] sm:$0xff]
        %v625 = vld [vmem:[#allocation5 + $0x60] sm:$0xff]
        %v626 = vld [vmem:[#allocation5 + $0x68] sm:$0xff]
        %v627 = vld [vmem:[#allocation5 + $0x70] sm:$0xff]
        %v628 = vld [vmem:[#allocation5 + $0x78] sm:$0xff]
        %v629 = vld [vmem:[#allocation5 + $0x80] sm:$0xff]
        %v630 = vld [vmem:[#allocation5 + $0x88] sm:$0xff]
        %v631 = vld [vmem:[#allocation5 + $0x90] sm:$0xff]
        %v632 = vld [vmem:[#allocation5 + $0x98] sm:$0xff]
        %v633 = vld [vmem:[#allocation5 + $0xa0] sm:$0xff]
        %v634 = vld [vmem:[#allocation5 + $0xa8] sm:$0xff]
        %v635 = vld [vmem:[#allocation5 + $0xb0] sm:$0xff]
        %v636 = vld [vmem:[#allocation5 + $0xb8] sm:$0xff]
        %v637 = vld [vmem:[#allocation5 + $0xc0] sm:$0xff]
        %v638 = vld [vmem:[#allocation5 + $0xc8] sm:$0xff]
        %v639 = vld [vmem:[#allocation5 + $0xd0] sm:$0xff]
        %v640 = vld [vmem:[#allocation5 + $0xd8] sm:$0xff]
        %v641 = vld [vmem:[#allocation5 + $0xe0] sm:$0xff]
        %v642 = vld [vmem:[#allocation5 + $0xe8] sm:$0xff]
        %v643 = vld [vmem:[#allocation5 + $0xf0] sm:$0xff]
        %v644 = vld [vmem:[#allocation5 + $0xf8] sm:$0xff]
        %v645 = vld [vmem:[%s6] sm:$0x1]
        %v647 = vlaneseq
        %v648 = vshrl.u32 %v647, 7
        %v649 = vsub.s32 0, %v648
        %v650 = vrot.slane %v645, %v649
        %652 = vmatprep.subr.mxu0 0.0
        %653 = vmatpush1.msra.mxu0 %v628
        %654 = vmatprep.subr.mxu0 0.0
        %655 = vmatpush1.msra.mxu0 %v627
        %656 = vmatprep.subr.mxu0 0.0
        %657 = vmatpush1.msra.mxu0 %v626
        %658 = vmatprep.subr.mxu0 0.0
        %659 = vmatpush1.msra.mxu0 %v625
        %660 = vmatprep.subr.mxu0 0.0
        %661 = vmatpush1.msra.mxu0 %v624
        %662 = vmatprep.subr.mxu0 0.0
        %663 = vmatpush1.msra.mxu0 %v623
        %664 = vmatprep.subr.mxu0 0.0
        %665 = vmatpush1.msra.mxu0 %v622
        %666 = vmatprep.subr.mxu0 0.0
        %667 = vmatpush1.msra.mxu0 %v621
        %668 = vmatprep.subr.mxu0 0.0
        %669 = vmatpush1.msra.mxu0 %v620
        %670 = vmatprep.subr.mxu0 0.0
        %671 = vmatpush1.msra.mxu0 %v619
        %672 = vmatprep.subr.mxu0 0.0
        %673 = vmatpush1.msra.mxu0 %v618
        %674 = vmatprep.subr.mxu0 0.0
        %675 = vmatpush1.msra.mxu0 %v617
        %676 = vmatprep.subr.mxu0 0.0
        %677 = vmatpush1.msra.mxu0 %v616
        %678 = vmatprep.subr.mxu0 0.0
        %679 = vmatpush1.msra.mxu0 %v615
        %680 = vmatprep.subr.mxu0 0.0
        %681 = vmatpush1.msra.mxu0 %v614
        %682 = vmatprep.subr.mxu0 0.0
        %683 = vmatpush1.msra.mxu0 %v613
        %684 = vmatprep.subr.mxu0 0.0
        %685 = vmatpush2.msra.mxu0 %v644
        %686 = vmatprep.subr.mxu0 0.0
        %687 = vmatpush2.msra.mxu0 %v643
        %688 = vmatprep.subr.mxu0 0.0
        %689 = vmatpush2.msra.mxu0 %v642
        %690 = vmatprep.subr.mxu0 0.0
        %691 = vmatpush2.msra.mxu0 %v641
        %692 = vmatprep.subr.mxu0 0.0
        %693 = vmatpush2.msra.mxu0 %v640
        %694 = vmatprep.subr.mxu0 0.0
        %695 = vmatpush2.msra.mxu0 %v639
        %696 = vmatprep.subr.mxu0 0.0
        %697 = vmatpush2.msra.mxu0 %v638
        %698 = vmatprep.subr.mxu0 0.0
        %699 = vmatpush2.msra.mxu0 %v637
        %700 = vmatprep.subr.mxu0 0.0
        %701 = vmatpush2.msra.mxu0 %v636
        %702 = vmatprep.subr.mxu0 0.0
        %703 = vmatpush2.msra.mxu0 %v635
        %704 = vmatprep.subr.mxu0 0.0
        %705 = vmatpush2.msra.mxu0 %v634
        %706 = vmatprep.subr.mxu0 0.0
        %707 = vmatpush2.msra.mxu0 %v633
        %708 = vmatprep.subr.mxu0 0.0
        %709 = vmatpush2.msra.mxu0 %v632
        %710 = vmatprep.subr.mxu0 0.0
        %711 = vmatpush2.msra.mxu0 %v631
        %712 = vmatprep.subr.mxu0 0.0
        %713 = vmatpush2.msra.mxu0 %v630
        %714 = vmatprep.subr.mxu0 0.0
        %715 = vmatpush2.msra.mxu0 %v629
        %716 = vmatprep.mubr.f32.mxu0 %v606
        %717 = vmatmul.mubr.f32.gmra.mxu0 %v605
        %v718 = vpop.f32.mrf.mxu0
        %v719 = vadd.f32 %v650, %v718
        %v720 = vpop.f32.mrf.mxu0
        %721 = vmatprep.mubr.f32.mxu0 %v608
        %722 = vmatmul.mubr.f32.gmra.mxu0 %v607
        %v723 = vpop.f32.mrf.mxu0
        %v724 = vadd.f32 %v650, %v723
        %v725 = vpop.f32.mrf.mxu0
        %726 = vmatprep.mubr.f32.mxu0 %v610
        %727 = vmatmul.mubr.f32.gmra.mxu0 %v609
        %v728 = vpop.f32.mrf.mxu0
        %v729 = vadd.f32 %v650, %v728
        %v730 = vpop.f32.mrf.mxu0
        %731 = vmatprep.mubr.f32.mxu0 %v612
        %732 = vmatmul.mubr.f32.gmra.mxu0 %v611
        %v733 = vpop.f32.mrf.mxu0
        %v734 = vadd.f32 %v650, %v733
        %v735 = vpop.f32.mrf.mxu0
        %736 = vdwg.mxu0
        %v737 = vlaneseq
        %v738 = vand.u32 %v737, 127
        %vm739 = vcmp.ge.s32.totalorder %v738, 4
        %v740 = vtanh.pop %v719
        %v741 = vtanh.pop %v724
        %v742 = vtanh.pop %v729
        %v743 = vtanh.pop %v734
        %v744 = vsel %vm739, %v740, %v719
        %v745 = vsel %vm739, %v741, %v724
        %v746 = vsel %vm739, %v742, %v729
        %v747 = vsel %vm739, %v743, %v734
        %748 = vst [vmem:[%s302] sm:$0xff] %v744
        %749 = vst [vmem:[%s302 + $0x8] sm:$0xff] %v745
        %750 = vst [vmem:[%s302 + $0x10] sm:$0xff] %v746
        %751 = vst [vmem:[%s302 + $0x18] sm:$0xff] %v747
        %s752 = sand.u32 %s183, 1
        %s753 = scalar_lea.sflag [#allocation4], %s752
        %s754 = sand.u32 %s183, 1
        %s755 = smul.addr %s754, 32
        %s756 = scalar_lea.vmem [#allocation7], %s755
        // Predicated region
        $region57: #{tpu_custom_call.1} parent=47 // pred_check
          %p757 = pneg %p193
        $region58: #{tpu_custom_call.1} parent=47 // pred_check_branch
          %759 = sbr.rel (%p757) target = $region60
        $region59: #{tpu_custom_call.1} parent=47 // pred_region
          %s760 = smul.u32 4, %s23
          %s762 = ssub.s32 512, 512
          %763 = vsyncadd %s753, %s762
          %s764 = smul.addr %s760, 128
          %s765 = scalar_lea.hbm %s7, %s764
          %s766 = sshll.u32 %s756, 4
          %s767 = int_to_ptr.vmem [resolvable:$true] %s766
          %772 = dma.vmem_to_hbm [thread:$0]  %s767, 512, %s765, %s753, 128, 128, 8
        $region60: #{tpu_custom_call.1} parent=47 // pred_fallthru
          _
      $region48: #{tpu_custom_call.1} parent=5 // pred_fallthru
        _
      %p773 = scmp.le.s32.totalorder 2, %s18
      // Predicated region
      $region61: #{tpu_custom_call.1} parent=5 // pred_check
        %p774 = pneg %p773
      $region62: #{tpu_custom_call.1} parent=5 // pred_check_branch
        %776 = sbr.rel (%p774) target = $region64
      $region63: #{tpu_custom_call.1} parent=5 // pred_region
        %s777 = ssub.s32 %s18, 2
        // Predicated region
        $region65: #{tpu_custom_call.1} parent=63 // pred_check
          %p778 = pneg %p199
        $region66: #{tpu_custom_call.1} parent=63 // pred_check_branch
          %780 = sbr.rel (%p778) target = $region68
        $region67: #{tpu_custom_call.1} parent=63 // pred_region
          %s781 = sand.u32 %s184, 1
          %s782 = scalar_lea.sflag [#allocation4], %s781
          %s783 = sand.u32 %s184, 1
          %s784 = smul.addr %s783, 32
          %s785 = scalar_lea.vmem [#allocation7], %s784
          %786 = dma.done %s782, 512
        $region68: #{tpu_custom_call.1} parent=63 // pred_fallthru
          _
      $region64: #{tpu_custom_call.1} parent=5 // pred_fallthru
        _
    $region6: #{tpu_custom_call.1} parent=1 // loop_footer
      %s22 = sadd.s32 1, %s18
    $region7: #{tpu_custom_call.1} parent=1 // loop_footer_branch
      %17 = sbr.rel target = $region3
    $region8: #{tpu_custom_call.1} parent=1 // loop_exit
      _
    %787 = vsyncpa [#allocation3], 1
    %s788 = scalar_lea.sflag [#allocation3], 1
    %789 = vsyncpa %s788, 1
    %790 = vsyncpa [#allocation6], 1
    %791 = vsyncpa [#allocation4], 1
    %s792 = scalar_lea.sflag [#allocation4], 1
    %793 = vsyncpa %s792, 1

// kernel: tpu_custom_call.1
$region0: #{tpu_custom_call.1}
  #allocation0 [shape = 'u32[]', space=smem, size = 0x4, offset = 0x4, fixed_abs, tag = 'smem constant byte address 0x4 - core index']
  #allocation1 [shape = 'u32[144,128]{1,0:T(1,128)}', space=vmem, size = 0x12000, scoped, tag = 'internal scratch']
  %s0 = inlined_call_operand.vmem [shape: f32[64,16], index: 0, kind: input, shape index: {}]
  %s1 = inlined_call_operand.vmem [shape: f32[16,256], index: 1, kind: input, shape index: {}]
  %s2 = inlined_call_operand.vmem [shape: f32[1,256], index: 2, kind: input, shape index: {}]
  %s3 = inlined_call_operand.hbm [shape: f32[256,256], index: 3, kind: input, shape index: {}]
  %s4 = inlined_call_operand.vmem [shape: f32[1,256], index: 4, kind: input, shape index: {}]
  %s5 = inlined_call_operand.hbm [shape: f32[256,128], index: 5, kind: input, shape index: {}]
  %s6 = inlined_call_operand.vmem [shape: f32[1,128], index: 6, kind: input, shape index: {}]
  %s7 = inlined_call_operand.hbm [shape: f32[64,128], index: 7, kind: output, shape index: {}]
  %s8 = sld [smem:[#allocation0]]
  $region69: #{tpu_custom_call.1} parent=0
    _
  %s10 = ssub.s32 1, %s8
  %s11 = scalar_select 0, %s10, %s8
  $region1: #{tpu_custom_call.1} parent=0
    #allocation2 [shape = 'u8[262144]{0}', space=vmem, size = 0x40000, scoped, tag = 'input window, operand 3, single buffered']
    #allocation3 [shape = 's32[2]{0}', space=sflag, size = 0x8, scoped, tag = 'scoped memory for tpu_custom_call.1']
    #allocation4 [shape = 's32[2]{0}', space=sflag, size = 0x8, scoped, tag = 'scoped memory for tpu_custom_call.1']
    #allocation5 [shape = 'u8[131072]{0}', space=vmem, size = 0x20000, scoped, tag = 'input window, operand 5, single buffered']
    #allocation6 [shape = 's32[1]{0}', space=sflag, size = 0x4, scoped, tag = 'scoped memory for tpu_custom_call.1']
    #allocation7 [shape = 'u8[32768]{0}', space=vmem, size = 0x8000, scoped, tag = 'output window, operand 0']
    %12 = vsyncpa [#allocation3], 0
    %13 = vsyncpa [#allocation6], 0
    %14 = vsyncpa [#allocation4], 0
    %s15 = scalar_lea.sflag [#allocation4], 1
    %16 = vsyncpa %s15, 0
    loop: start=0, step=1, limit=4
    $region2: #{tpu_custom_call.1} parent=1 // loop_pre_header
      _
    $region3: #{tpu_custom_call.1} parent=1 // loop_header
      %s18 = sphi 0, %s22
      %p19 = scmp.ge.s32.totalorder %s18, 4
      %s28 = sphi 0, %s30
      %s31 = sphi 0, %s28
      %s32 = sphi 0, %s31
      %s48 = sphi 0, %s32
      %s52 = sphi 0, %s52
      %s54 = sphi 0, %s52
      %s55 = sphi 0, %s54
      %s69 = sphi 0, %s55
      %s73 = sphi 0, %s73
      %s75 = sphi 0, %s73
      %s76 = sphi 0, %s75
      %s90 = sphi 0, %s76
      %s94 = sphi 0, %s94
      %s96 = sphi 0, %s94
      %s97 = sphi 0, %s96
      %s111 = sphi 0, %s97
      %s115 = sphi 0, %s115
      %s117 = sphi 0, %s115
      %s118 = sphi 0, %s117
      %s132 = sphi 0, %s118
      %s136 = sphi 0, %s136
      %s138 = sphi 0, %s136
      %s139 = sphi 0, %s138
      %s153 = sphi 0, %s139
      %s157 = sphi 0, %s157
      %s159 = sphi 0, %s157
      %s160 = sphi 0, %s159
      %s174 = sphi 0, %s160
      %s180 = sphi 0, %s182
      %s183 = sphi 0, %s180
      %s184 = sphi 0, %s183
      %s200 = sphi 0, %s184
    $region4: #{tpu_custom_call.1} parent=1 // loop_header_branch
      %21 = sbr.rel (%p19) target = $region8
    $region5: #{tpu_custom_call.1} parent=1 // loop_body
      %s23 = ssub.s32 %s18, 1
      %s24 = ssub.s32 %s18, 2
      %s25 = sadd.s32 %s18, 1
      %s26 = ssub.s32 %s18, %s25
      %p27 = scmp.eq.s32.totalorder %s26, 0
      %s29 = sadd.s32 %s28, 1
      %s30 = scalar_select %p27, %s28, %s29
      %p33 = pneg %p27
      %p34 = scmp.eq.s32.totalorder %s18, 1
      %p35 = por %p33, %p34
      %p36 = scmp.ne.s32.totalorder %s28, %s31
      %p37 = scmp.eq.s32.totalorder %s18, 0
      %p38 = por %p36, %p37
      %p39 = scmp.ne.s32.totalorder %s28, %s31
      %p40 = scmp.eq.s32.totalorder %s23, 1
      %p41 = por %p39, %p40
      %p42 = scmp.ne.s32.totalorder %s31, %s32
      %p43 = scmp.eq.s32.totalorder %s23, 0
      %p44 = por %p42, %p43
      %p45 = scmp.ne.s32.totalorder %s31, %s32
      %p46 = scmp.eq.s32.totalorder %s24, 1
      %p47 = por %p45, %p46
      %p49 = scmp.ne.s32.totalorder %s32, %s48
      %p50 = scmp.eq.s32.totalorder %s24, 0
      %p51 = por %p49, %p50
      %s53 = sadd.s32 %s52, 1
      %p56 = scmp.eq.s32.totalorder %s18, 1
      %p57 = scmp.ne.s32.totalorder %s52, %s54
      %p58 = scmp.eq.s32.totalorder %s18, 0
      %p59 = por %p57, %p58
      %p60 = scmp.ne.s32.totalorder %s52, %s54
      %p61 = scmp.eq.s32.totalorder %s23, 1
      %p62 = por %p60, %p61
      %p63 = scmp.ne.s32.totalorder %s54, %s55
      %p64 = scmp.eq.s32.totalorder %s23, 0
      %p65 = por %p63, %p64
      %p66 = scmp.ne.s32.totalorder %s54, %s55
      %p67 = scmp.eq.s32.totalorder %s24, 1
      %p68 = por %p66, %p67
      %p70 = scmp.ne.s32.totalorder %s55, %s69
      %p71 = scmp.eq.s32.totalorder %s24, 0
      %p72 = por %p70, %p71
      %s74 = sadd.s32 %s73, 1
      %p77 = scmp.eq.s32.totalorder %s18, 1
      %p78 = scmp.ne.s32.totalorder %s73, %s75
      %p79 = scmp.eq.s32.totalorder %s18, 0
      %p80 = por %p78, %p79
      %p81 = scmp.ne.s32.totalorder %s73, %s75
      %p82 = scmp.eq.s32.totalorder %s23, 1
      %p83 = por %p81, %p82
      %p84 = scmp.ne.s32.totalorder %s75, %s76
      %p85 = scmp.eq.s32.totalorder %s23, 0
      %p86 = por %p84, %p85
      %p87 = scmp.ne.s32.totalorder %s75, %s76
      %p88 = scmp.eq.s32.totalorder %s24, 1
      %p89 = por %p87, %p88
      %p91 = scmp.ne.s32.totalorder %s76, %s90
      %p92 = scmp.eq.s32.totalorder %s24, 0
      %p93 = por %p91, %p92
      %s95 = sadd.s32 %s94, 1
      %p98 = scmp.eq.s32.totalorder %s18, 1
      %p99 = scmp.ne.s32.totalorder %s94, %s96
      %p100 = scmp.eq.s32.totalorder %s18, 0
      %p101 = por %p99, %p100
      %p102 = scmp.ne.s32.totalorder %s94, %s96
      %p103 = scmp.eq.s32.totalorder %s23, 1
      %p104 = por %p102, %p103
      %p105 = scmp.ne.s32.totalorder %s96, %s97
      %p106 = scmp.eq.s32.totalorder %s23, 0
      %p107 = por %p105, %p106
      %p108 = scmp.ne.s32.totalorder %s96, %s97
      %p109 = scmp.eq.s32.totalorder %s24, 1
      %p110 = por %p108, %p109
      %p112 = scmp.ne.s32.totalorder %s97, %s111
      %p113 = scmp.eq.s32.totalorder %s24, 0
      %p114 = por %p112, %p113
      %s116 = sadd.s32 %s115, 1
      %p119 = scmp.eq.s32.totalorder %s18, 1
      %p120 = scmp.ne.s32.totalorder %s115, %s117
      %p121 = scmp.eq.s32.totalorder %s18, 0
      %p122 = por %p120, %p121
      %p123 = scmp.ne.s32.totalorder %s115, %s117
      %p124 = scmp.eq.s32.totalorder %s23, 1
      %p125 = por %p123, %p124
      %p126 = scmp.ne.s32.totalorder %s117, %s118
      %p127 = scmp.eq.s32.totalorder %s23, 0
      %p128 = por %p126, %p127
      %p129 = scmp.ne.s32.totalorder %s117, %s118
      %p130 = scmp.eq.s32.totalorder %s24, 1
      %p131 = por %p129, %p130
      %p133 = scmp.ne.s32.totalorder %s118, %s132
      %p134 = scmp.eq.s32.totalorder %s24, 0
      %p135 = por %p133, %p134
      %s137 = sadd.s32 %s136, 1
      %p140 = scmp.eq.s32.totalorder %s18, 1
      %p141 = scmp.ne.s32.totalorder %s136, %s138
      %p142 = scmp.eq.s32.totalorder %s18, 0
      %p143 = por %p141, %p142
      %p144 = scmp.ne.s32.totalorder %s136, %s138
      %p145 = scmp.eq.s32.totalorder %s23, 1
      %p146 = por %p144, %p145
      %p147 = scmp.ne.s32.totalorder %s138, %s139
      %p148 = scmp.eq.s32.totalorder %s23, 0
      %p149 = por %p147, %p148
      %p150 = scmp.ne.s32.totalorder %s138, %s139
      %p151 = scmp.eq.s32.totalorder %s24, 1
      %p152 = por %p150, %p151
      %p154 = scmp.ne.s32.totalorder %s139, %s153
      %p155 = scmp.eq.s32.totalorder %s24, 0
      %p156 = por %p154, %p155
      %s158 = sadd.s32 %s157, 1
      %p161 = scmp.eq.s32.totalorder %s18, 1
      %p162 = scmp.ne.s32.totalorder %s157, %s159
      %p163 = scmp.eq.s32.totalorder %s18, 0
      %p164 = por %p162, %p163
      %p165 = scmp.ne.s32.totalorder %s157, %s159
      %p166 = scmp.eq.s32.totalorder %s23, 1
      %p167 = por %p165, %p166
      %p168 = scmp.ne.s32.totalorder %s159, %s160
      %p169 = scmp.eq.s32.totalorder %s23, 0
      %p170 = por %p168, %p169
      %p171 = scmp.ne.s32.totalorder %s159, %s160
      %p172 = scmp.eq.s32.totalorder %s24, 1
      %p173 = por %p171, %p172
      %p175 = scmp.ne.s32.totalorder %s160, %s174
      %p176 = scmp.eq.s32.totalorder %s24, 0
      %p177 = por %p175, %p176
      %s178 = ssub.s32 %s18, %s25
      %p179 = scmp.eq.s32.totalorder %s178, 0
      %s181 = sadd.s32 %s180, 1
      %s182 = scalar_select %p179, %s180, %s181
      %p185 = pneg %p179
      %p186 = scmp.eq.s32.totalorder %s18, 1
      %p187 = por %p185, %p186
      %p188 = scmp.ne.s32.totalorder %s180, %s183
      %p189 = scmp.eq.s32.totalorder %s18, 0
      %p190 = por %p188, %p189
      %p191 = scmp.ne.s32.totalorder %s180, %s183
      %p192 = scmp.eq.s32.totalorder %s23, 1
      %p193 = por %p191, %p192
      %p194 = scmp.ne.s32.totalorder %s183, %s184
      %p195 = scmp.eq.s32.totalorder %s23, 0
      %p196 = por %p194, %p195
      %p197 = scmp.ne.s32.totalorder %s183, %s184
      %p198 = scmp.eq.s32.totalorder %s24, 1
      %p199 = por %p197, %p198
      %p201 = scmp.ne.s32.totalorder %s184, %s200
      %p202 = scmp.eq.s32.totalorder %s24, 0
      %p203 = por %p201, %p202
      %p204 = scmp.le.s32.totalorder 1, %s18
      %p205 = scmp.lt.s32.totalorder %s18, 3
      %p206 = pnand %p204, %p205
      %p207 = pneg %p206
      // Predicated region
      $region9: #{tpu_custom_call.1} parent=5 // pred_check
        _
      $region10: #{tpu_custom_call.1} parent=5 // pred_check_branch
        %209 = sbr.rel (%p206) target = $region12
      $region11: #{tpu_custom_call.1} parent=5 // pred_region
        %s210 = ssub.s32 %s18, 1
        // Predicated region
        $region13: #{tpu_custom_call.1} parent=11 // pred_check
          %p211 = pneg %p65
        $region14: #{tpu_custom_call.1} parent=11 // pred_check_branch
          %213 = sbr.rel (%p211) target = $region16
        $region15: #{tpu_custom_call.1} parent=11 // pred_region
          _
        $region16: #{tpu_custom_call.1} parent=11 // pred_fallthru
          _
        // Predicated region
        $region17: #{tpu_custom_call.1} parent=11 // pred_check
          %p214 = pneg %p86
        $region18: #{tpu_custom_call.1} parent=11 // pred_check_branch
          %216 = sbr.rel (%p214) target = $region20
        $region19: #{tpu_custom_call.1} parent=11 // pred_region
          _
        $region20: #{tpu_custom_call.1} parent=11 // pred_fallthru
          _
        // Predicated region
        $region21: #{tpu_custom_call.1} parent=11 // pred_check
          %p217 = pneg %p107
        $region22: #{tpu_custom_call.1} parent=11 // pred_check_branch
          %219 = sbr.rel (%p217) target = $region24
        $region23: #{tpu_custom_call.1} parent=11 // pred_region
          %s221 = ssub.s32 8192, 8192
          %222 = vsyncadd [#allocation3], %s221
          %s223 = sshll.u32 [#allocation2], 4
          %s224 = int_to_ptr.vmem [resolvable:$true] %s223
          %229 = dma.hbm_to_vmem [thread:$0]  %s3, 8192, %s224, [#allocation3], 256, 256, 16
        $region24: #{tpu_custom_call.1} parent=11 // pred_fallthru
          _
        // Predicated region
        $region25: #{tpu_custom_call.1} parent=11 // pred_check
          %p230 = pneg %p128
        $region26: #{tpu_custom_call.1} parent=11 // pred_check_branch
          %232 = sbr.rel (%p230) target = $region28
        $region27: #{tpu_custom_call.1} parent=11 // pred_region
          _
        $region28: #{tpu_custom_call.1} parent=11 // pred_fallthru
          _
        // Predicated region
        $region29: #{tpu_custom_call.1} parent=11 // pred_check
          %p233 = pneg %p149
        $region30: #{tpu_custom_call.1} parent=11 // pred_check_branch
          %235 = sbr.rel (%p233) target = $region32
        $region31: #{tpu_custom_call.1} parent=11 // pred_region
          %s237 = ssub.s32 4096, 4096
          %238 = vsyncadd [#allocation6], %s237
          %s239 = sshll.u32 [#allocation5], 4
          %s240 = int_to_ptr.vmem [resolvable:$true] %s239
          %245 = dma.hbm_to_vmem [thread:$0]  %s5, 4096, %s240, [#allocation6], 128, 128, 8
        $region32: #{tpu_custom_call.1} parent=11 // pred_fallthru
          _
        // Predicated region
        $region33: #{tpu_custom_call.1} parent=11 // pred_check
          %p246 = pneg %p170
        $region34: #{tpu_custom_call.1} parent=11 // pred_check_branch
          %248 = sbr.rel (%p246) target = $region36
        $region35: #{tpu_custom_call.1} parent=11 // pred_region
          _
        $region36: #{tpu_custom_call.1} parent=11 // pred_fallthru
          _
      $region12: #{tpu_custom_call.1} parent=5 // pred_fallthru
        _
      %p249 = scmp.lt.s32.totalorder %s18, 2
      // Predicated region
      $region37: #{tpu_custom_call.1} parent=5 // pred_check
        %p250 = pneg %p249
      $region38: #{tpu_custom_call.1} parent=5 // pred_check_branch
        %252 = sbr.rel (%p250) target = $region40
      $region39: #{tpu_custom_call.1} parent=5 // pred_region
        // Predicated region
        $region41: #{tpu_custom_call.1} parent=39 // pred_check
          %p253 = pneg %p38
        $region42: #{tpu_custom_call.1} parent=39 // pred_check_branch
          %255 = sbr.rel (%p253) target = $region44
        $region43: #{tpu_custom_call.1} parent=39 // pred_region
          %s256 = smul.u32 4, %s18
          %p257 = scmp.lt.s32.totalorder %s256, 7
          %s258 = scalar_select %p257, %s256, 7
          %s259 = smul.addr %s258, 8
          %s260 = scalar_lea.vmem %s0, %s259
          %s261 = smul.u32 4, %s18
        $region44: #{tpu_custom_call.1} parent=39 // pred_fallthru
          _
      $region40: #{tpu_custom_call.1} parent=5 // pred_fallthru
        _
      %p262 = scmp.le.s32.totalorder 1, %s18
      %p263 = scmp.lt.s32.totalorder %s18, 3
      %p264 = pnand %p262, %p263
      %p265 = pneg %p264
      // Predicated region
      $region45: #{tpu_custom_call.1} parent=5 // pred_check
        _
      $region46: #{tpu_custom_call.1} parent=5 // pred_check_branch
        %267 = sbr.rel (%p264) target = $region48
      $region47: #{tpu_custom_call.1} parent=5 // pred_region
        %s268 = ssub.s32 %s18, 1
        // Predicated region
        $region49: #{tpu_custom_call.1} parent=47 // pred_check
          %p269 = pneg %p107
        $region50: #{tpu_custom_call.1} parent=47 // pred_check_branch
          %271 = sbr.rel (%p269) target = $region52
        $region51: #{tpu_custom_call.1} parent=47 // pred_region
          %272 = dma.done [#allocation3], 8192
        $region52: #{tpu_custom_call.1} parent=47 // pred_fallthru
          _
        // Predicated region
        $region53: #{tpu_custom_call.1} parent=47 // pred_check
          %p273 = pneg %p149
        $region54: #{tpu_custom_call.1} parent=47 // pred_check_branch
          %275 = sbr.rel (%p273) target = $region56
        $region55: #{tpu_custom_call.1} parent=47 // pred_region
          %276 = dma.done [#allocation6], 4096
        $region56: #{tpu_custom_call.1} parent=47 // pred_fallthru
          _
        %s277 = smul.u32 4, %s23
        %p278 = scmp.lt.s32.totalorder %s277, 7
        %s279 = scalar_select %p278, %s277, 7
        %s280 = smul.addr %s279, 8
        %s281 = scalar_lea.vmem %s0, %s280
        %p282 = pneg %p44
        %p283 = pneg %p41
        %p284 = pneg %p65
        %p285 = pneg %p62
        %p286 = pneg %p86
        %p287 = pneg %p83
        %p288 = pneg %p107
        %p289 = pneg %p104
        %p290 = pneg %p128
        %p291 = pneg %p125
        %p292 = pneg %p149
        %p293 = pneg %p146
        %p294 = pneg %p170
        %p295 = pneg %p167
        %p296 = pneg %p196
        %p297 = pneg %p193
        %s298 = sand.u32 %s183, 1
        %s299 = scalar_lea.sflag [#allocation4], %s298
        %s300 = sand.u32 %s183, 1
        %s301 = smul.addr %s300, 32
        %s302 = scalar_lea.vmem [#allocation7], %s301
        %s303 = smul.u32 4, %s23
        %p304 = scmp.lt.s32.totalorder %s303, 7
        %s305 = scalar_select %p304, %s303, 7
        %s306 = smul.addr %s305, 8
        %s307 = scalar_lea.vmem %s0, %s306
        %s308 = smul.u32 4, %s23
        %s309 = smul.u32 4, %s23
        %v310 = vld [vmem:[%s307] sm:$0xff]
        %v311 = vld [vmem:[%s307 + $0x8] sm:$0xff]
        %v312 = vld [vmem:[%s307 + $0x10] sm:$0xff]
        %v313 = vld [vmem:[%s307 + $0x18] sm:$0xff]
        %v314 = vld [vmem:[%s1] sm:$0xff]
        %v315 = vld [vmem:[%s1 + $0x8] sm:$0xff]
        %v316 = vld [vmem:[%s1 + $0x10] sm:$0xff]
        %v317 = vld [vmem:[%s1 + $0x18] sm:$0xff]
        %v318 = vld [vmem:[%s2] sm:$0x3]
        %v320 = vlaneseq
        %v321 = vshrl.u32 %v320, 7
        %v322 = vsub.s32 0, %v321
        %v323 = vrot.slane %v318, %v322
        %v324 = vlaneseq
        %v325 = vshrl.u32 %v324, 7
        %v326 = vsub.s32 1, %v325
        %v327 = vrot.slane %v318, %v326
        %vm330 = vcmask 130048
        %v332 = vsel %vm330, %v310, 0
        %v335 = vsel %vm330, %v311, 0
        %v338 = vsel %vm330, %v312, 0
        %v341 = vsel %vm330, %v313, 0
        %343 = vmatprep.subr.mxu0 0.0
        %344 = vmatpush1.msra.mxu0 0.0
        %345 = vmatprep.subr.mxu0 0.0
        %346 = vmatpush1.msra.mxu0 0.0
        %347 = vmatprep.subr.mxu0 0.0
        %348 = vmatpush1.msra.mxu0 0.0
        %349 = vmatprep.subr.mxu0 0.0
        %350 = vmatpush1.msra.mxu0 0.0
        %351 = vmatprep.subr.mxu0 0.0
        %352 = vmatpush1.msra.mxu0 0.0
        %353 = vmatprep.subr.mxu0 0.0
        %354 = vmatpush1.msra.mxu0 0.0
        %355 = vmatprep.subr.mxu0 0.0
        %356 = vmatpush1.msra.mxu0 0.0
        %357 = vmatprep.subr.mxu0 0.0
        %358 = vmatpush1.msra.mxu0 0.0
        %359 = vmatprep.subr.mxu0 0.0
        %360 = vmatpush1.msra.mxu0 0.0
        %361 = vmatprep.subr.mxu0 0.0
        %362 = vmatpush1.msra.mxu0 0.0
        %363 = vmatprep.subr.mxu0 0.0
        %364 = vmatpush1.msra.mxu0 0.0
        %365 = vmatprep.subr.mxu0 0.0
        %366 = vmatpush1.msra.mxu0 0.0
        %367 = vmatprep.subr.mxu0 0.0
        %368 = vmatpush1.msra.mxu0 0.0
        %369 = vmatprep.subr.mxu0 0.0
        %370 = vmatpush1.msra.mxu0 0.0
        %371 = vmatprep.subr.mxu0 %v317
        %372 = vmatpush1.msra.mxu0 %v316
        %373 = vmatprep.subr.mxu0 %v315
        %374 = vmatpush1.msra.mxu0 %v314
        %375 = vmatprep.subr.mxu0 0.0
        %376 = vmatpush2.msra.mxu0 0.0
        %377 = vmatprep.subr.mxu0 0.0
        %378 = vmatpush2.msra.mxu0 0.0
        %379 = vmatprep.subr.mxu0 0.0
        %380 = vmatpush2.msra.mxu0 0.0
        %381 = vmatprep.subr.mxu0 0.0
        %382 = vmatpush2.msra.mxu0 0.0
        %383 = vmatprep.subr.mxu0 0.0
        %384 = vmatpush2.msra.mxu0 0.0
        %385 = vmatprep.subr.mxu0 0.0
        %386 = vmatpush2.msra.mxu0 0.0
        %387 = vmatprep.subr.mxu0 0.0
        %388 = vmatpush2.msra.mxu0 0.0
        %389 = vmatprep.subr.mxu0 0.0
        %390 = vmatpush2.msra.mxu0 0.0
        %391 = vmatprep.subr.mxu0 0.0
        %392 = vmatpush2.msra.mxu0 0.0
        %393 = vmatprep.subr.mxu0 0.0
        %394 = vmatpush2.msra.mxu0 0.0
        %395 = vmatprep.subr.mxu0 0.0
        %396 = vmatpush2.msra.mxu0 0.0
        %397 = vmatprep.subr.mxu0 0.0
        %398 = vmatpush2.msra.mxu0 0.0
        %399 = vmatprep.subr.mxu0 0.0
        %400 = vmatpush2.msra.mxu0 0.0
        %401 = vmatprep.subr.mxu0 0.0
        %402 = vmatpush2.msra.mxu0 0.0
        %403 = vmatprep.subr.mxu0 0.0
        %404 = vmatpush2.msra.mxu0 0.0
        %405 = vmatprep.subr.mxu0 0.0
        %406 = vmatpush2.msra.mxu0 0.0
        %407 = vmatprep.mubr.f32.mxu0 0.0
        %408 = vmatmul.mubr.f32.gmra.mxu0 %v332
        %v409 = vpop.f32.mrf.mxu0
        %v410 = vadd.f32 %v323, %v409
        %v411 = vpop.f32.mrf.mxu0
        %v412 = vadd.f32 %v327, %v411
        %413 = vmatprep.mubr.f32.mxu0 0.0
        %414 = vmatmul.mubr.f32.gmra.mxu0 %v335
        %v415 = vpop.f32.mrf.mxu0
        %v416 = vadd.f32 %v323, %v415
        %v417 = vpop.f32.mrf.mxu0
        %v418 = vadd.f32 %v327, %v417
        %419 = vmatprep.mubr.f32.mxu0 0.0
        %420 = vmatmul.mubr.f32.gmra.mxu0 %v338
        %v421 = vpop.f32.mrf.mxu0
        %v422 = vadd.f32 %v323, %v421
        %v423 = vpop.f32.mrf.mxu0
        %v424 = vadd.f32 %v327, %v423
        %425 = vmatprep.mubr.f32.mxu0 0.0
        %426 = vmatmul.mubr.f32.gmra.mxu0 %v341
        %v427 = vpop.f32.mrf.mxu0
        %v428 = vadd.f32 %v323, %v427
        %v429 = vpop.f32.mrf.mxu0
        %v430 = vadd.f32 %v327, %v429
        %431 = vdwg.mxu0
        %v432 = vmax.f32 %v410, 0.0
        %v433 = vmax.f32 %v412, 0.0
        %v434 = vmax.f32 %v416, 0.0
        %v435 = vmax.f32 %v418, 0.0
        %v436 = vmax.f32 %v422, 0.0
        %v437 = vmax.f32 %v424, 0.0
        %v438 = vmax.f32 %v428, 0.0
        %v439 = vmax.f32 %v430, 0.0
        %v440 = vld [vmem:[#allocation2] sm:$0xff]
        %v441 = vld [vmem:[#allocation2 + $0x8] sm:$0xff]
        %v442 = vld [vmem:[#allocation2 + $0x10] sm:$0xff]
        %v443 = vld [vmem:[#allocation2 + $0x18] sm:$0xff]
        %v444 = vld [vmem:[#allocation2 + $0x20] sm:$0xff]
        %v445 = vld [vmem:[#allocation2 + $0x28] sm:$0xff]
        %v446 = vld [vmem:[#allocation2 + $0x30] sm:$0xff]
        %v447 = vld [vmem:[#allocation2 + $0x38] sm:$0xff]
        %v448 = vld [vmem:[#allocation2 + $0x40] sm:$0xff]
        %v449 = vld [vmem:[#allocation2 + $0x48] sm:$0xff]
        %v450 = vld [vmem:[#allocation2 + $0x50] sm:$0xff]
        %v451 = vld [vmem:[#allocation2 + $0x58] sm:$0xff]
        %v452 = vld [vmem:[#allocation2 + $0x60] sm:$0xff]
        %v453 = vld [vmem:[#allocation2 + $0x68] sm:$0xff]
        %v454 = vld [vmem:[#allocation2 + $0x70] sm:$0xff]
        %v455 = vld [vmem:[#allocation2 + $0x78] sm:$0xff]
        %v456 = vld [vmem:[#allocation2 + $0x80] sm:$0xff]
        %v457 = vld [vmem:[#allocation2 + $0x88] sm:$0xff]
        %v458 = vld [vmem:[#allocation2 + $0x90] sm:$0xff]
        %v459 = vld [vmem:[#allocation2 + $0x98] sm:$0xff]
        %v460 = vld [vmem:[#allocation2 + $0xa0] sm:$0xff]
        %v461 = vld [vmem:[#allocation2 + $0xa8] sm:$0xff]
        %v462 = vld [vmem:[#allocation2 + $0xb0] sm:$0xff]
        %v463 = vld [vmem:[#allocation2 + $0xb8] sm:$0xff]
        %v464 = vld [vmem:[#allocation2 + $0xc0] sm:$0xff]
        %v465 = vld [vmem:[#allocation2 + $0xc8] sm:$0xff]
        %v466 = vld [vmem:[#allocation2 + $0xd0] sm:$0xff]
        %v467 = vld [vmem:[#allocation2 + $0xd8] sm:$0xff]
        %v468 = vld [vmem:[#allocation2 + $0xe0] sm:$0xff]
        %v469 = vld [vmem:[#allocation2 + $0xe8] sm:$0xff]
        %v470 = vld [vmem:[#allocation2 + $0xf0] sm:$0xff]
        %v471 = vld [vmem:[#allocation2 + $0xf8] sm:$0xff]
        %v472 = vld [vmem:[#allocation2 + $0x100] sm:$0xff]
        %v473 = vld [vmem:[#allocation2 + $0x108] sm:$0xff]
        %v474 = vld [vmem:[#allocation2 + $0x110] sm:$0xff]
        %v475 = vld [vmem:[#allocation2 + $0x118] sm:$0xff]
        %v476 = vld [vmem:[#allocation2 + $0x120] sm:$0xff]
        %v477 = vld [vmem:[#allocation2 + $0x128] sm:$0xff]
        %v478 = vld [vmem:[#allocation2 + $0x130] sm:$0xff]
        %v479 = vld [vmem:[#allocation2 + $0x138] sm:$0xff]
        %v480 = vld [vmem:[#allocation2 + $0x140] sm:$0xff]
        %v481 = vld [vmem:[#allocation2 + $0x148] sm:$0xff]
        %v482 = vld [vmem:[#allocation2 + $0x150] sm:$0xff]
        %v483 = vld [vmem:[#allocation2 + $0x158] sm:$0xff]
        %v484 = vld [vmem:[#allocation2 + $0x160] sm:$0xff]
        %v485 = vld [vmem:[#allocation2 + $0x168] sm:$0xff]
        %v486 = vld [vmem:[#allocation2 + $0x170] sm:$0xff]
        %v487 = vld [vmem:[#allocation2 + $0x178] sm:$0xff]
        %v488 = vld [vmem:[#allocation2 + $0x180] sm:$0xff]
        %v489 = vld [vmem:[#allocation2 + $0x188] sm:$0xff]
        %v490 = vld [vmem:[#allocation2 + $0x190] sm:$0xff]
        %v491 = vld [vmem:[#allocation2 + $0x198] sm:$0xff]
        %v492 = vld [vmem:[#allocation2 + $0x1a0] sm:$0xff]
        %v493 = vld [vmem:[#allocation2 + $0x1a8] sm:$0xff]
        %v494 = vld [vmem:[#allocation2 + $0x1b0] sm:$0xff]
        %v495 = vld [vmem:[#allocation2 + $0x1b8] sm:$0xff]
        %v496 = vld [vmem:[#allocation2 + $0x1c0] sm:$0xff]
        %v497 = vld [vmem:[#allocation2 + $0x1c8] sm:$0xff]
        %v498 = vld [vmem:[#allocation2 + $0x1d0] sm:$0xff]
        %v499 = vld [vmem:[#allocation2 + $0x1d8] sm:$0xff]
        %v500 = vld [vmem:[#allocation2 + $0x1e0] sm:$0xff]
        %v501 = vld [vmem:[#allocation2 + $0x1e8] sm:$0xff]
        %v502 = vld [vmem:[#allocation2 + $0x1f0] sm:$0xff]
        %v503 = vld [vmem:[#allocation2 + $0x1f8] sm:$0xff]
        %v504 = vld [vmem:[%s4] sm:$0x3]
        %v506 = vlaneseq
        %v507 = vshrl.u32 %v506, 7
        %v508 = vsub.s32 0, %v507
        %v509 = vrot.slane %v504, %v508
        %v510 = vlaneseq
        %v511 = vshrl.u32 %v510, 7
        %v512 = vsub.s32 1, %v511
        %v513 = vrot.slane %v504, %v512
        %516 = vmatprep.subr.mxu0 %v471
        %517 = vmatpush1.msra.mxu0 %v470
        %518 = vmatprep.subr.mxu0 %v469
        %519 = vmatpush1.msra.mxu0 %v468
        %520 = vmatprep.subr.mxu0 %v467
        %521 = vmatpush1.msra.mxu0 %v466
        %522 = vmatprep.subr.mxu0 %v465
        %523 = vmatpush1.msra.mxu0 %v464
        %524 = vmatprep.subr.mxu0 %v463
        %525 = vmatpush1.msra.mxu0 %v462
        %526 = vmatprep.subr.mxu0 %v461
        %527 = vmatpush1.msra.mxu0 %v460
        %528 = vmatprep.subr.mxu0 %v459
        %529 = vmatpush1.msra.mxu0 %v458
        %530 = vmatprep.subr.mxu0 %v457
        %531 = vmatpush1.msra.mxu0 %v456
        %532 = vmatprep.subr.mxu0 %v455
        %533 = vmatpush1.msra.mxu0 %v454
        %534 = vmatprep.subr.mxu0 %v453
        %535 = vmatpush1.msra.mxu0 %v452
        %536 = vmatprep.subr.mxu0 %v451
        %537 = vmatpush1.msra.mxu0 %v450
        %538 = vmatprep.subr.mxu0 %v449
        %539 = vmatpush1.msra.mxu0 %v448
        %540 = vmatprep.subr.mxu0 %v447
        %541 = vmatpush1.msra.mxu0 %v446
        %542 = vmatprep.subr.mxu0 %v445
        %543 = vmatpush1.msra.mxu0 %v444
        %544 = vmatprep.subr.mxu0 %v443
        %545 = vmatpush1.msra.mxu0 %v442
        %546 = vmatprep.subr.mxu0 %v441
        %547 = vmatpush1.msra.mxu0 %v440
        %548 = vmatprep.subr.mxu0 %v503
        %549 = vmatpush2.msra.mxu0 %v502
        %550 = vmatprep.subr.mxu0 %v501
        %551 = vmatpush2.msra.mxu0 %v500
        %552 = vmatprep.subr.mxu0 %v499
        %553 = vmatpush2.msra.mxu0 %v498
        %554 = vmatprep.subr.mxu0 %v497
        %555 = vmatpush2.msra.mxu0 %v496
        %556 = vmatprep.subr.mxu0 %v495
        %557 = vmatpush2.msra.mxu0 %v494
        %558 = vmatprep.subr.mxu0 %v493
        %559 = vmatpush2.msra.mxu0 %v492
        %560 = vmatprep.subr.mxu0 %v491
        %561 = vmatpush2.msra.mxu0 %v490
        %562 = vmatprep.subr.mxu0 %v489
        %563 = vmatpush2.msra.mxu0 %v488
        %564 = vmatprep.subr.mxu0 %v487
        %565 = vmatpush2.msra.mxu0 %v486
        %566 = vmatprep.subr.mxu0 %v485
        %567 = vmatpush2.msra.mxu0 %v484
        %568 = vmatprep.subr.mxu0 %v483
        %569 = vmatpush2.msra.mxu0 %v482
        %570 = vmatprep.subr.mxu0 %v481
        %571 = vmatpush2.msra.mxu0 %v480
        %572 = vmatprep.subr.mxu0 %v479
        %573 = vmatpush2.msra.mxu0 %v478
        %574 = vmatprep.subr.mxu0 %v477
        %575 = vmatpush2.msra.mxu0 %v476
        %576 = vmatprep.subr.mxu0 %v475
        %577 = vmatpush2.msra.mxu0 %v474
        %578 = vmatprep.subr.mxu0 %v473
        %579 = vmatpush2.msra.mxu0 %v472
        %580 = vmatprep.mubr.f32.mxu0 %v433
        %581 = vmatmul.mubr.f32.gmra.mxu0 %v432
        %v582 = vpop.f32.mrf.mxu0
        %v583 = vadd.f32 %v509, %v582
        %v584 = vpop.f32.mrf.mxu0
        %v585 = vadd.f32 %v513, %v584
        %586 = vmatprep.mubr.f32.mxu0 %v435
        %587 = vmatmul.mubr.f32.gmra.mxu0 %v434
        %v588 = vpop.f32.mrf.mxu0
        %v589 = vadd.f32 %v509, %v588
        %v590 = vpop.f32.mrf.mxu0
        %v591 = vadd.f32 %v513, %v590
        %592 = vmatprep.mubr.f32.mxu0 %v437
        %593 = vmatmul.mubr.f32.gmra.mxu0 %v436
        %v594 = vpop.f32.mrf.mxu0
        %v595 = vadd.f32 %v509, %v594
        %v596 = vpop.f32.mrf.mxu0
        %v597 = vadd.f32 %v513, %v596
        %598 = vmatprep.mubr.f32.mxu0 %v439
        %599 = vmatmul.mubr.f32.gmra.mxu0 %v438
        %v600 = vpop.f32.mrf.mxu0
        %v601 = vadd.f32 %v509, %v600
        %v602 = vpop.f32.mrf.mxu0
        %v603 = vadd.f32 %v513, %v602
        %604 = vdwg.mxu0
        %v605 = vmax.f32 %v583, 0.0
        %v606 = vmax.f32 %v585, 0.0
        %v607 = vmax.f32 %v589, 0.0
        %v608 = vmax.f32 %v591, 0.0
        %v609 = vmax.f32 %v595, 0.0
        %v610 = vmax.f32 %v597, 0.0
        %v611 = vmax.f32 %v601, 0.0
        %v612 = vmax.f32 %v603, 0.0
        %v613 = vld [vmem:[#allocation5] sm:$0xff]
        %v614 = vld [vmem:[#allocation5 + $0x8] sm:$0xff]
        %v615 = vld [vmem:[#allocation5 + $0x10] sm:$0xff]
        %v616 = vld [vmem:[#allocation5 + $0x18] sm:$0xff]
        %v617 = vld [vmem:[#allocation5 + $0x20] sm:$0xff]
        %v618 = vld [vmem:[#allocation5 + $0x28] sm:$0xff]
        %v619 = vld [vmem:[#allocation5 + $0x30] sm:$0xff]
        %v620 = vld [vmem:[#allocation5 + $0x38] sm:$0xff]
        %v621 = vld [vmem:[#allocation5 + $0x40] sm:$0xff]
        %v622 = vld [vmem:[#allocation5 + $0x48] sm:$0xff]
        %v623 = vld [vmem:[#allocation5 + $0x50] sm:$0xff]
        %v624 = vld [vmem:[#allocation5 + $0x58] sm:$0xff]
        %v625 = vld [vmem:[#allocation5 + $0x60] sm:$0xff]
        %v626 = vld [vmem:[#allocation5 + $0x68] sm:$0xff]
        %v627 = vld [vmem:[#allocation5 + $0x70] sm:$0xff]
        %v628 = vld [vmem:[#allocation5 + $0x78] sm:$0xff]
        %v629 = vld [vmem:[#allocation5 + $0x80] sm:$0xff]
        %v630 = vld [vmem:[#allocation5 + $0x88] sm:$0xff]
        %v631 = vld [vmem:[#allocation5 + $0x90] sm:$0xff]
        %v632 = vld [vmem:[#allocation5 + $0x98] sm:$0xff]
        %v633 = vld [vmem:[#allocation5 + $0xa0] sm:$0xff]
        %v634 = vld [vmem:[#allocation5 + $0xa8] sm:$0xff]
        %v635 = vld [vmem:[#allocation5 + $0xb0] sm:$0xff]
        %v636 = vld [vmem:[#allocation5 + $0xb8] sm:$0xff]
        %v637 = vld [vmem:[#allocation5 + $0xc0] sm:$0xff]
        %v638 = vld [vmem:[#allocation5 + $0xc8] sm:$0xff]
        %v639 = vld [vmem:[#allocation5 + $0xd0] sm:$0xff]
        %v640 = vld [vmem:[#allocation5 + $0xd8] sm:$0xff]
        %v641 = vld [vmem:[#allocation5 + $0xe0] sm:$0xff]
        %v642 = vld [vmem:[#allocation5 + $0xe8] sm:$0xff]
        %v643 = vld [vmem:[#allocation5 + $0xf0] sm:$0xff]
        %v644 = vld [vmem:[#allocation5 + $0xf8] sm:$0xff]
        %v645 = vld [vmem:[%s6] sm:$0x1]
        %v647 = vlaneseq
        %v648 = vshrl.u32 %v647, 7
        %v649 = vsub.s32 0, %v648
        %v650 = vrot.slane %v645, %v649
        %652 = vmatprep.subr.mxu0 0.0
        %653 = vmatpush1.msra.mxu0 %v628
        %654 = vmatprep.subr.mxu0 0.0
        %655 = vmatpush1.msra.mxu0 %v627
        %656 = vmatprep.subr.mxu0 0.0
        %657 = vmatpush1.msra.mxu0 %v626
        %658 = vmatprep.subr.mxu0 0.0
        %659 = vmatpush1.msra.mxu0 %v625
        %660 = vmatprep.subr.mxu0 0.0
        %661 = vmatpush1.msra.mxu0 %v624
        %662 = vmatprep.subr.mxu0 0.0
        %663 = vmatpush1.msra.mxu0 %v623
        %664 = vmatprep.subr.mxu0 0.0
        %665 = vmatpush1.msra.mxu0 %v622
        %666 = vmatprep.subr.mxu0 0.0
        %667 = vmatpush1.msra.mxu0 %v621
        %668 = vmatprep.subr.mxu0 0.0
        %669 = vmatpush1.msra.mxu0 %v620
        %670 = vmatprep.subr.mxu0 0.0
        %671 = vmatpush1.msra.mxu0 %v619
        %672 = vmatprep.subr.mxu0 0.0
        %673 = vmatpush1.msra.mxu0 %v618
        %674 = vmatprep.subr.mxu0 0.0
        %675 = vmatpush1.msra.mxu0 %v617
        %676 = vmatprep.subr.mxu0 0.0
        %677 = vmatpush1.msra.mxu0 %v616
        %678 = vmatprep.subr.mxu0 0.0
        %679 = vmatpush1.msra.mxu0 %v615
        %680 = vmatprep.subr.mxu0 0.0
        %681 = vmatpush1.msra.mxu0 %v614
        %682 = vmatprep.subr.mxu0 0.0
        %683 = vmatpush1.msra.mxu0 %v613
        %684 = vmatprep.subr.mxu0 0.0
        %685 = vmatpush2.msra.mxu0 %v644
        %686 = vmatprep.subr.mxu0 0.0
        %687 = vmatpush2.msra.mxu0 %v643
        %688 = vmatprep.subr.mxu0 0.0
        %689 = vmatpush2.msra.mxu0 %v642
        %690 = vmatprep.subr.mxu0 0.0
        %691 = vmatpush2.msra.mxu0 %v641
        %692 = vmatprep.subr.mxu0 0.0
        %693 = vmatpush2.msra.mxu0 %v640
        %694 = vmatprep.subr.mxu0 0.0
        %695 = vmatpush2.msra.mxu0 %v639
        %696 = vmatprep.subr.mxu0 0.0
        %697 = vmatpush2.msra.mxu0 %v638
        %698 = vmatprep.subr.mxu0 0.0
        %699 = vmatpush2.msra.mxu0 %v637
        %700 = vmatprep.subr.mxu0 0.0
        %701 = vmatpush2.msra.mxu0 %v636
        %702 = vmatprep.subr.mxu0 0.0
        %703 = vmatpush2.msra.mxu0 %v635
        %704 = vmatprep.subr.mxu0 0.0
        %705 = vmatpush2.msra.mxu0 %v634
        %706 = vmatprep.subr.mxu0 0.0
        %707 = vmatpush2.msra.mxu0 %v633
        %708 = vmatprep.subr.mxu0 0.0
        %709 = vmatpush2.msra.mxu0 %v632
        %710 = vmatprep.subr.mxu0 0.0
        %711 = vmatpush2.msra.mxu0 %v631
        %712 = vmatprep.subr.mxu0 0.0
        %713 = vmatpush2.msra.mxu0 %v630
        %714 = vmatprep.subr.mxu0 0.0
        %715 = vmatpush2.msra.mxu0 %v629
        %716 = vmatprep.mubr.f32.mxu0 %v606
        %717 = vmatmul.mubr.f32.gmra.mxu0 %v605
        %v718 = vpop.f32.mrf.mxu0
        %v719 = vadd.f32 %v650, %v718
        %v720 = vpop.f32.mrf.mxu0
        %721 = vmatprep.mubr.f32.mxu0 %v608
        %722 = vmatmul.mubr.f32.gmra.mxu0 %v607
        %v723 = vpop.f32.mrf.mxu0
        %v724 = vadd.f32 %v650, %v723
        %v725 = vpop.f32.mrf.mxu0
        %726 = vmatprep.mubr.f32.mxu0 %v610
        %727 = vmatmul.mubr.f32.gmra.mxu0 %v609
        %v728 = vpop.f32.mrf.mxu0
        %v729 = vadd.f32 %v650, %v728
        %v730 = vpop.f32.mrf.mxu0
        %731 = vmatprep.mubr.f32.mxu0 %v612
        %732 = vmatmul.mubr.f32.gmra.mxu0 %v611
        %v733 = vpop.f32.mrf.mxu0
        %v734 = vadd.f32 %v650, %v733
        %v735 = vpop.f32.mrf.mxu0
        %736 = vdwg.mxu0
        %v737 = vlaneseq
        %v738 = vand.u32 %v737, 127
        %vm739 = vcmp.ge.s32.totalorder %v738, 4
        %v740 = vtanh.pop %v719
        %v741 = vtanh.pop %v724
        %v742 = vtanh.pop %v729
        %v743 = vtanh.pop %v734
        %v744 = vsel %vm739, %v740, %v719
        %v745 = vsel %vm739, %v741, %v724
        %v746 = vsel %vm739, %v742, %v729
        %v747 = vsel %vm739, %v743, %v734
        %748 = vst [vmem:[%s302] sm:$0xff] %v744
        %749 = vst [vmem:[%s302 + $0x8] sm:$0xff] %v745
        %750 = vst [vmem:[%s302 + $0x10] sm:$0xff] %v746
        %751 = vst [vmem:[%s302 + $0x18] sm:$0xff] %v747
        %s752 = sand.u32 %s183, 1
        %s753 = scalar_lea.sflag [#allocation4], %s752
        %s754 = sand.u32 %s183, 1
        %s755 = smul.addr %s754, 32
        %s756 = scalar_lea.vmem [#allocation7], %s755
        // Predicated region
        $region57: #{tpu_custom_call.1} parent=47 // pred_check
          %p757 = pneg %p193
        $region58: #{tpu_custom_call.1} parent=47 // pred_check_branch
          %759 = sbr.rel (%p757) target = $region60
        $region59: #{tpu_custom_call.1} parent=47 // pred_region
          %s760 = smul.u32 4, %s23
          %s762 = ssub.s32 512, 512
          %763 = vsyncadd %s753, %s762
          %s764 = smul.addr %s760, 128
          %s765 = scalar_lea.hbm %s7, %s764
          %s766 = sshll.u32 %s756, 4
          %s767 = int_to_ptr.vmem [resolvable:$true] %s766
          %772 = dma.vmem_to_hbm [thread:$0]  %s767, 512, %s765, %s753, 128, 128, 8
        $region60: #{tpu_custom_call.1} parent=47 // pred_fallthru
          _
      $region48: #{tpu_custom_call.1} parent=5 // pred_fallthru
        _
      %p773 = scmp.le.s32.totalorder 2, %s18
      // Predicated region
      $region61: #{tpu_custom_call.1} parent=5 // pred_check
        %p774 = pneg %p773
      $region62: #{tpu_custom_call.1} parent=5 // pred_check_branch
        %776 = sbr.rel (%p774) target = $region64
      $region63: #{tpu_custom_call.1} parent=5 // pred_region
        %s777 = ssub.s32 %s18, 2
        // Predicated region
        $region65: #{tpu_custom_call.1} parent=63 // pred_check
          %p778 = pneg %p199
        $region66: #{tpu_custom_call.1} parent=63 // pred_check_branch
          %780 = sbr.rel (%p778) target = $region68
        $region67: #{tpu_custom_call.1} parent=63 // pred_region
          %s781 = sand.u32 %s184, 1
          %s782 = scalar_lea.sflag [#allocation4], %s781
          %s783 = sand.u32 %s184, 1
          %s784 = smul.addr %s783, 32
          %s785 = scalar_lea.vmem [#allocation7], %s784
          %786 = dma.done %s782, 512
        $region68: #{tpu_custom_call.1} parent=63 // pred_fallthru
          _
      $region64: #{tpu_custom_call.1} parent=5 // pred_fallthru
        _
    $region6: #{tpu_custom_call.1} parent=1 // loop_footer
      %s22 = sadd.s32 1, %s18
    $region7: #{tpu_custom_call.1} parent=1 // loop_footer_branch
      %17 = sbr.rel target = $region3
    $region8: #{tpu_custom_call.1} parent=1 // loop_exit
      _
    %787 = vsyncpa [#allocation3], 1
    %s788 = scalar_lea.sflag [#allocation3], 1
    %789 = vsyncpa %s788, 1
    %790 = vsyncpa [#allocation6], 1
    %791 = vsyncpa [#allocation4], 1
    %s792 = scalar_lea.sflag [#allocation4], 1
    %793 = vsyncpa %s792, 1

</llo_original>
